<compile_context>
chip_gen: v7x
topology: tpu7x:2x2x1
jax: 0.10.0
libtpu: 0.0.40
codegen_flags: <defaults>
</compile_context>

<pallas_src>
import functools

import jax
import jax.numpy as jnp
import numpy as np
from jax import lax
from jax.experimental import pallas as pl
from jax.experimental.pallas import tpu as pltpu


# ----------------------------------------------------------------------------
# Fused kernel: conv_a + conv_b (reinterpreted) + attention + graph matmul +
# conv_d, one sample (all T slabs) per grid step.
# ----------------------------------------------------------------------------
def _fused_agcn_kernel(num_subset, t_len, v_len, c_out,
                       alpha_ref, x_ref, x2_ref, pa_ref, mask_ref,
                       wad_ref, bad_ref, what_ref, bhat_ref, bds_ref,
                       o_ref, g_scr, a2_scr):
    x = x_ref[0]                      # (C, T*V) f32, lanes = (t, v)
    alpha = alpha_ref[0, 0]           # scalar read once from SMEM
    inv_cout = 1.0 / c_out

    # conv_a (with bias) and the conv_d weight application for ALL subsets in
    # one stacked MXU matmul; bias broadcast once.
    fad = (jnp.dot(wad_ref[...], x, preferred_element_type=jnp.float32)
           + bad_ref[...])                                        # (2*S*Cout, TV)

    # conv_b for all subsets, computed directly in the torch-.view row order
    # G[(i, c, t), v] = conv_b_i(x)[c, t, v] via the wrapper-expanded weight
    # (Wb_i ⊗ I_T) applied to the (C*T, V) view of x.  Lives in VMEM scratch.
    g_scr[...] = (jnp.dot(what_ref[...], x2_ref[0],
                          preferred_element_type=jnp.float32)
                  + bhat_ref[...])                                # (S*Cout*T, V)

    y = None
    for i in range(num_subset):
        fa_i = fad[i * c_out:(i + 1) * c_out, :]                  # (Cout, TV)
        xd_i = fad[(num_subset + i) * c_out:(num_subset + i + 1) * c_out, :]

        # Lane-dense A2 strip for subset i: column block t <- G rows
        # [i*Cout*T + t*Cout, +Cout).  This IS the torch raw-.view slab.
        base = i * c_out * t_len
        for t in range(t_len):
            r0 = base + t * c_out
            a2_scr[:, t * v_len:(t + 1) * v_len] = g_scr[r0:r0 + c_out, :]
        a2_i = a2_scr[...]                                        # (Cout, TV)

        # Full (TV, TV) scores in ONE MXU matmul (contraction over the leading
        # axis -> no materialised transpose); the additive mask pushes
        # cross-slab entries to -1e30 so the column softmax stays per-slab.
        s = (lax.dot_general(fa_i, a2_i,
                             dimension_numbers=(((0,), (0,)), ((), ())),
                             preferred_element_type=jnp.float32) * inv_cout
             + mask_ref[...])                                     # (TV, TV)

        # softmax over rows (torch dim=-2); masked entries give exp() == 0.
        m = jnp.max(s, axis=0, keepdims=True)
        e = jnp.exp(s - m)
        inv_den = pl.reciprocal(jnp.sum(e, axis=0, keepdims=True))  # exact
        a1 = pa_ref[i] + alpha * (e * inv_den)                    # (TV, TV)

        # (Wd_i @ x) @ A1  ==  Wd_i @ (x @ A1): graph matmul + conv_d weights
        # in one lane-dense (Cout, TV) @ (TV, TV) MXU op per subset.
        contrib = jnp.dot(xd_i, a1, preferred_element_type=jnp.float32)
        y = contrib if y is None else y + contrib

    o_ref[0] = (y + bds_ref[...]).astype(o_ref.dtype)             # lane-dense store


# ----------------------------------------------------------------------------
# Wrapper
# ----------------------------------------------------------------------------
def adaptive_gcn_v3(x, A, alpha, wa, ba, wb, bb, wd, bd, return_attn=False):
    """x: (N, C, T, V) float32.  Returns (y, A3_list) like the torch module."""
    N, C, T, V = x.shape
    S, Cout, _ = wa.shape
    TV = T * V
    f32 = jnp.float32

    x = x.astype(f32)
    x_w = x.reshape(N, C, TV)          # free view: lanes = (t, v)
    x2 = x.reshape(N, C * T, V)        # free view: rows = (c, t), lanes = v

    # conv_a and conv_d weights stacked into one matmul operand; conv_d bias is
    # applied once at the end (sum over subsets).
    wa_all = wa.reshape(S * Cout, C).astype(f32)
    wd_all = wd.reshape(S * Cout, C).astype(f32)
    wad = jnp.concatenate([wa_all, wd_all], axis=0)               # (2*S*Cout, C)
    bad = jnp.concatenate([ba.astype(f32).reshape(S * Cout, 1),
                           jnp.zeros((S * Cout, 1), f32)], axis=0)
    bd_sum = jnp.sum(bd.astype(f32), axis=0)                      # (Cout, 1)

    # Expanded conv_b weight: Ŵ[(i,c,t),(k,u)] = Wb[i,c,k] * [t == u], so that
    # Ŵ @ x.reshape(C*T, V) yields conv_b_i(x) already in the torch raw-.view
    # row order (i, c, t) -> slab extraction is a contiguous row block.
    eye_t = jnp.eye(T, dtype=f32)
    w_hat = jnp.einsum('ock,tu->octku', wb.astype(f32), eye_t
                       ).reshape(S * Cout * T, C * T)
    b_hat = jnp.broadcast_to(bb.astype(f32).reshape(S, Cout, 1, 1),
                             (S, Cout, T, 1)).reshape(S * Cout * T, 1)

    # Block-diagonal PA (per subset) and the additive pre-softmax block mask.
    pa_big = jnp.einsum('tu,ivw->itvuw', eye_t, A.astype(f32)
                        ).reshape(S, TV, TV)
    neg_mask = jnp.where(jnp.kron(eye_t, jnp.ones((V, V), f32)) > 0,
                         jnp.float32(0.0), jnp.float32(-1e30))    # (TV, TV)
    alpha = jnp.asarray(alpha, f32).reshape(1, 1)

    out = pl.pallas_call(
        functools.partial(_fused_agcn_kernel, S, T, V, Cout),
        out_shape=jax.ShapeDtypeStruct((N, Cout, TV), jnp.float32),
        grid=(N,),
        in_specs=[
            pl.BlockSpec(memory_space=pltpu.MemorySpace.SMEM),       # alpha (1,1)
            pl.BlockSpec((1, C, TV), lambda n: (n, 0, 0)),           # x (C,TV) view
            pl.BlockSpec((1, C * T, V), lambda n: (n, 0, 0)),        # x (C*T,V) view
            pl.BlockSpec((S, TV, TV), lambda n: (0, 0, 0)),          # block-diag PA
            pl.BlockSpec((TV, TV), lambda n: (0, 0)),                # additive mask
            pl.BlockSpec((2 * S * Cout, C), lambda n: (0, 0)),       # [Wa; Wd]
            pl.BlockSpec((2 * S * Cout, 1), lambda n: (0, 0)),       # [ba; 0]
            pl.BlockSpec((S * Cout * T, C * T), lambda n: (0, 0)),   # expanded Wb
            pl.BlockSpec((S * Cout * T, 1), lambda n: (0, 0)),       # expanded bb
            pl.BlockSpec((Cout, 1), lambda n: (0, 0)),               # sum_i bd
        ],
        out_specs=pl.BlockSpec((1, Cout, TV), lambda n: (n, 0, 0)),
        scratch_shapes=[
            pltpu.VMEM((S * Cout * T, V), jnp.float32),              # G (conv_b)
            pltpu.VMEM((Cout, TV), jnp.float32),                     # A2 strip
        ],
        compiler_params=pltpu.CompilerParams(
            dimension_semantics=("parallel",),
            vmem_limit_bytes=16 * 1024 * 1024),
    )(alpha, x_w, x2, pa_big, neg_mask, wad, bad, w_hat, b_hat, bd_sum)

    y = out.reshape(N, Cout, T, V)

    A3_list = []
    if return_attn:
        a3 = jnp.transpose(x, (0, 2, 1, 3)).reshape(N * T, C, V)
        A3_list = [a3 for _ in range(S)]
    return y, A3_list


# ----------------------------------------------------------------------------
# Pure-JAX reference (mirrors the torch forward exactly) for verification.
# ----------------------------------------------------------------------------
def reference_forward(x, A, alpha, wa, ba, wb, bb, wd, bd):
    N, C, T, V = x.shape
    S, Cout, _ = wa.shape
    a = alpha.reshape(())
    y = None
    for i in range(S):
        fa = jnp.einsum('oc,nctv->notv', wa[i], x) + ba[i, :, 0][None, :, None, None]
        fb = jnp.einsum('oc,nctv->notv', wb[i], x) + bb[i, :, 0][None, :, None, None]
        A1 = fa.transpose(0, 2, 3, 1).reshape(N * T, V, Cout)
        A2 = fb.reshape(N * T, Cout, V)          # raw NCHW reinterpretation (torch .view)
        attn = jnp.matmul(A1, A2) / Cout
        attn = jax.nn.softmax(attn, axis=-2)
        A1m = A[i] + attn * a
        A3 = x.transpose(0, 2, 1, 3).reshape(N * T, C, V)
        z = jnp.matmul(A3, A1m).reshape(N, T, C, V).transpose(0, 2, 1, 3)   # (N, C, T, V)
        z = jnp.einsum('oc,nctv->notv', wd[i], z) + bd[i, :, 0][None, :, None, None]
        y = z if y is None else y + z
    return y


if __name__ == "__main__":
    # Small shapes consistent with the module: N=2, C_in=4, C_out=8, T=8, V=16, 3 subsets.
    N, Cin, Cout, T, V, S = 2, 4, 8, 8, 16, 3

    key = jax.random.PRNGKey(0)
    ks = jax.random.split(key, 9)
    x = jax.random.normal(ks[0], (N, Cin, T, V), jnp.float32)

    # Deterministic parameter init (shapes from __init__); alpha is zero at init
    # in the module, but we use a nonzero value so the attention path is exercised.
    A = jax.random.normal(ks[1], (S, V, V), jnp.float32) * 0.1
    alpha = jnp.full((1, 1), 0.5, jnp.float32)
    wa = jax.random.normal(ks[2], (S, Cout, Cin), jnp.float32) * 0.2
    ba = jax.random.normal(ks[3], (S, Cout, 1), jnp.float32) * 0.05
    wb = jax.random.normal(ks[4], (S, Cout, Cin), jnp.float32) * 0.2
    bb = jax.random.normal(ks[5], (S, Cout, 1), jnp.float32) * 0.05
    wd = jax.random.normal(ks[6], (S, Cout, Cin), jnp.float32) * 0.2
    bd = jax.random.normal(ks[7], (S, Cout, 1), jnp.float32) * 0.05

    y_ref = reference_forward(x, A, alpha, wa, ba, wb, bb, wd, bd)

    y, a3_list = adaptive_gcn_v3(x, A, alpha, wa, ba, wb, bb, wd, bd)
    y = jax.block_until_ready(y)
    np.testing.assert_allclose(np.asarray(y), np.asarray(y_ref), rtol=2e-4, atol=2e-4)
    assert y.shape == (N, Cout, T, V)

    # return_attn path (A3 is a free reshape of x, built in the wrapper).
    y2, a3_list2 = adaptive_gcn_v3(x, A, alpha, wa, ba, wb, bb, wd, bd, return_attn=True)
    jax.block_until_ready(y2)
    assert len(a3_list2) == S and a3_list2[0].shape == (N * T, Cin, V)

    print("KERNEL_OK")
</pallas_src>

<mosaic_0001>
module attributes {stable_mosaic.version = 11 : i64} {
  func.func @_fused_agcn_kernel(%arg0: i32, %arg1: memref<1x1xf32, #tpu.memory_space<smem>>, %arg2: memref<1x4x128xf32, #tpu.memory_space<vmem>>, %arg3: memref<1x32x16xf32, #tpu.memory_space<vmem>>, %arg4: memref<3x128x128xf32, #tpu.memory_space<vmem>>, %arg5: memref<128x128xf32, #tpu.memory_space<vmem>>, %arg6: memref<48x4xf32, #tpu.memory_space<vmem>>, %arg7: memref<48x1xf32, #tpu.memory_space<vmem>>, %arg8: memref<192x32xf32, #tpu.memory_space<vmem>>, %arg9: memref<192x1xf32, #tpu.memory_space<vmem>>, %arg10: memref<8x1xf32, #tpu.memory_space<vmem>>, %arg11: memref<1x8x128xf32, #tpu.memory_space<vmem>>, %arg12: memref<192x16xf32, #tpu.memory_space<vmem>>, %arg13: memref<8x128xf32, #tpu.memory_space<vmem>>) attributes {dimension_semantics = [#tpu.dimension_semantics<parallel>], iteration_bounds = array<i64: 2>, scalar_prefetch = 0 : i64, scratch_operands = 2 : i64, tpu.core_type = #tpu.core_type<tc>, window_params = [{transform_indices = @transform_0, window_bounds = array<i64: 1, 1>}, {transform_indices = @transform_1, window_bounds = array<i64: 1, 4, 128>}, {transform_indices = @transform_2, window_bounds = array<i64: 1, 32, 16>}, {pipeline_mode = #tpu.pipeline_mode<synchronous>, transform_indices = @transform_3, window_bounds = array<i64: 3, 128, 128>}, {pipeline_mode = #tpu.pipeline_mode<synchronous>, transform_indices = @transform_4, window_bounds = array<i64: 128, 128>}, {pipeline_mode = #tpu.pipeline_mode<synchronous>, transform_indices = @transform_5, window_bounds = array<i64: 48, 4>}, {pipeline_mode = #tpu.pipeline_mode<synchronous>, transform_indices = @transform_6, window_bounds = array<i64: 48, 1>}, {pipeline_mode = #tpu.pipeline_mode<synchronous>, transform_indices = @transform_7, window_bounds = array<i64: 192, 32>}, {pipeline_mode = #tpu.pipeline_mode<synchronous>, transform_indices = @transform_8, window_bounds = array<i64: 192, 1>}, {pipeline_mode = #tpu.pipeline_mode<synchronous>, transform_indices = @transform_9, window_bounds = array<i64: 8, 1>}, {transform_indices = @transform_10, window_bounds = array<i64: 1, 8, 128>}]} {
    %c0 = arith.constant 0 : index
    %c0_0 = arith.constant 0 : index
    %c0_1 = arith.constant 0 : index
    %0 = vector.load %arg2[%c0, %c0_0, %c0_1] : memref<1x4x128xf32, #tpu.memory_space<vmem>>, vector<1x4x128xf32>
    %1 = vector.shape_cast %0 : vector<1x4x128xf32> to vector<4x128xf32>
    %c0_2 = arith.constant 0 : index
    %c0_3 = arith.constant 0 : index
    %2 = memref.load %arg1[%c0_2, %c0_3] : memref<1x1xf32, #tpu.memory_space<smem>>
    %c0_4 = arith.constant 0 : index
    %c0_5 = arith.constant 0 : index
    %3 = vector.load %arg6[%c0_4, %c0_5] : memref<48x4xf32, #tpu.memory_space<vmem>>, vector<48x4xf32>
    %cst = arith.constant dense<0.000000e+00> : vector<48x128xf32>
    %4 = tpu.matmul %3, %1, %cst {dimension_numbers = #tpu.dot_dimension_numbers<[1], [0], [0], [1], [0, 0, 1, 1], [], []>} : vector<48x4xf32>, vector<4x128xf32>, vector<48x128xf32> -> vector<48x128xf32>
    %c0_6 = arith.constant 0 : index
    %c0_7 = arith.constant 0 : index
    %5 = vector.load %arg7[%c0_6, %c0_7] : memref<48x1xf32, #tpu.memory_space<vmem>>, vector<48x1xf32>
    %6 = vector.broadcast %5 : vector<48x1xf32> to vector<48x128xf32>
    %7 = arith.addf %4, %6 : vector<48x128xf32>
    %c0_8 = arith.constant 0 : index
    %c0_9 = arith.constant 0 : index
    %8 = vector.load %arg8[%c0_8, %c0_9] : memref<192x32xf32, #tpu.memory_space<vmem>>, vector<192x32xf32>
    %c0_10 = arith.constant 0 : index
    %c0_11 = arith.constant 0 : index
    %c0_12 = arith.constant 0 : index
    %9 = vector.load %arg3[%c0_10, %c0_11, %c0_12] : memref<1x32x16xf32, #tpu.memory_space<vmem>>, vector<1x32x16xf32>
    %10 = vector.shape_cast %9 : vector<1x32x16xf32> to vector<32x16xf32>
    %cst_13 = arith.constant dense<0.000000e+00> : vector<192x16xf32>
    %11 = tpu.matmul %8, %10, %cst_13 {dimension_numbers = #tpu.dot_dimension_numbers<[1], [0], [0], [1], [0, 0, 1, 1], [], []>} : vector<192x32xf32>, vector<32x16xf32>, vector<192x16xf32> -> vector<192x16xf32>
    %c0_14 = arith.constant 0 : index
    %c0_15 = arith.constant 0 : index
    %12 = vector.load %arg9[%c0_14, %c0_15] : memref<192x1xf32, #tpu.memory_space<vmem>>, vector<192x1xf32>
    %13 = vector.broadcast %12 : vector<192x1xf32> to vector<192x16xf32>
    %14 = arith.addf %11, %13 : vector<192x16xf32>
    %c0_16 = arith.constant 0 : index
    %c0_17 = arith.constant 0 : index
    %15 = vector.load %arg12[%c0_16, %c0_17] : memref<192x16xf32, #tpu.memory_space<vmem>>, vector<192x16xf32>
    tpu.vector_store %arg12[%c0_16, %c0_17], %14 {strides = array<i32>} : memref<192x16xf32, #tpu.memory_space<vmem>>, vector<192x16xf32>,
    %16 = vector.extract_strided_slice %7 {offsets = [0, 0], sizes = [8, 128], strides = [1, 1]} : vector<48x128xf32> to vector<8x128xf32>
    %17 = vector.extract_strided_slice %7 {offsets = [24, 0], sizes = [8, 128], strides = [1, 1]} : vector<48x128xf32> to vector<8x128xf32>
    %c0_18 = arith.constant 0 : index
    %c0_19 = arith.constant 0 : index
    %18 = vector.load %arg12[%c0_18, %c0_19] : memref<192x16xf32, #tpu.memory_space<vmem>>, vector<8x16xf32>
    %c0_20 = arith.constant 0 : index
    %c0_21 = arith.constant 0 : index
    %19 = vector.load %arg13[%c0_20, %c0_21] : memref<8x128xf32, #tpu.memory_space<vmem>>, vector<8x16xf32>
    tpu.vector_store %arg13[%c0_20, %c0_21], %18 {strides = array<i32>} : memref<8x128xf32, #tpu.memory_space<vmem>>, vector<8x16xf32>,
    %c8 = arith.constant 8 : index
    %c0_22 = arith.constant 0 : index
    %20 = vector.load %arg12[%c8, %c0_22] : memref<192x16xf32, #tpu.memory_space<vmem>>, vector<8x16xf32>
    %c0_23 = arith.constant 0 : index
    %c16 = arith.constant 16 : index
    %21 = vector.load %arg13[%c0_23, %c16] : memref<8x128xf32, #tpu.memory_space<vmem>>, vector<8x16xf32>
    tpu.vector_store %arg13[%c0_23, %c16], %20 {strides = array<i32>} : memref<8x128xf32, #tpu.memory_space<vmem>>, vector<8x16xf32>,
    %c16_24 = arith.constant 16 : index
    %c0_25 = arith.constant 0 : index
    %22 = vector.load %arg12[%c16_24, %c0_25] : memref<192x16xf32, #tpu.memory_space<vmem>>, vector<8x16xf32>
    %c0_26 = arith.constant 0 : index
    %c32 = arith.constant 32 : index
    %23 = vector.load %arg13[%c0_26, %c32] : memref<8x128xf32, #tpu.memory_space<vmem>>, vector<8x16xf32>
    tpu.vector_store %arg13[%c0_26, %c32], %22 {strides = array<i32>} : memref<8x128xf32, #tpu.memory_space<vmem>>, vector<8x16xf32>,
    %c24 = arith.constant 24 : index
    %c0_27 = arith.constant 0 : index
    %24 = vector.load %arg12[%c24, %c0_27] : memref<192x16xf32, #tpu.memory_space<vmem>>, vector<8x16xf32>
    %c0_28 = arith.constant 0 : index
    %c48 = arith.constant 48 : index
    %25 = vector.load %arg13[%c0_28, %c48] : memref<8x128xf32, #tpu.memory_space<vmem>>, vector<8x16xf32>
    tpu.vector_store %arg13[%c0_28, %c48], %24 {strides = array<i32>} : memref<8x128xf32, #tpu.memory_space<vmem>>, vector<8x16xf32>,
    %c32_29 = arith.constant 32 : index
    %c0_30 = arith.constant 0 : index
    %26 = vector.load %arg12[%c32_29, %c0_30] : memref<192x16xf32, #tpu.memory_space<vmem>>, vector<8x16xf32>
    %c0_31 = arith.constant 0 : index
    %c64 = arith.constant 64 : index
    %27 = vector.load %arg13[%c0_31, %c64] : memref<8x128xf32, #tpu.memory_space<vmem>>, vector<8x16xf32>
    tpu.vector_store %arg13[%c0_31, %c64], %26 {strides = array<i32>} : memref<8x128xf32, #tpu.memory_space<vmem>>, vector<8x16xf32>,
    %c40 = arith.constant 40 : index
    %c0_32 = arith.constant 0 : index
    %28 = vector.load %arg12[%c40, %c0_32] : memref<192x16xf32, #tpu.memory_space<vmem>>, vector<8x16xf32>
    %c0_33 = arith.constant 0 : index
    %c80 = arith.constant 80 : index
    %29 = vector.load %arg13[%c0_33, %c80] : memref<8x128xf32, #tpu.memory_space<vmem>>, vector<8x16xf32>
    tpu.vector_store %arg13[%c0_33, %c80], %28 {strides = array<i32>} : memref<8x128xf32, #tpu.memory_space<vmem>>, vector<8x16xf32>,
    %c48_34 = arith.constant 48 : index
    %c0_35 = arith.constant 0 : index
    %30 = vector.load %arg12[%c48_34, %c0_35] : memref<192x16xf32, #tpu.memory_space<vmem>>, vector<8x16xf32>
    %c0_36 = arith.constant 0 : index
    %c96 = arith.constant 96 : index
    %31 = vector.load %arg13[%c0_36, %c96] : memref<8x128xf32, #tpu.memory_space<vmem>>, vector<8x16xf32>
    tpu.vector_store %arg13[%c0_36, %c96], %30 {strides = array<i32>} : memref<8x128xf32, #tpu.memory_space<vmem>>, vector<8x16xf32>,
    %c56 = arith.constant 56 : index
    %c0_37 = arith.constant 0 : index
    %32 = vector.load %arg12[%c56, %c0_37] : memref<192x16xf32, #tpu.memory_space<vmem>>, vector<8x16xf32>
    %c0_38 = arith.constant 0 : index
    %c112 = arith.constant 112 : index
    %33 = vector.load %arg13[%c0_38, %c112] : memref<8x128xf32, #tpu.memory_space<vmem>>, vector<8x16xf32>
    tpu.vector_store %arg13[%c0_38, %c112], %32 {strides = array<i32>} : memref<8x128xf32, #tpu.memory_space<vmem>>, vector<8x16xf32>,
    %c0_39 = arith.constant 0 : index
    %c0_40 = arith.constant 0 : index
    %34 = vector.load %arg13[%c0_39, %c0_40] : memref<8x128xf32, #tpu.memory_space<vmem>>, vector<8x128xf32>
    %cst_41 = arith.constant dense<0.000000e+00> : vector<128x128xf32>
    %35 = tpu.matmul %16, %34, %cst_41 {dimension_numbers = #tpu.dot_dimension_numbers<[0], [0], [1], [1], [0, 1, 1, 1], [], []>} : vector<8x128xf32>, vector<8x128xf32>, vector<128x128xf32> -> vector<128x128xf32>
    %cst_42 = arith.constant 1.250000e-01 : f32
    %36 = vector.broadcast %cst_42 : f32 to vector<128x128xf32>
    %37 = arith.mulf %35, %36 : vector<128x128xf32>
    %c0_43 = arith.constant 0 : index
    %c0_44 = arith.constant 0 : index
    %38 = vector.load %arg5[%c0_43, %c0_44] : memref<128x128xf32, #tpu.memory_space<vmem>>, vector<128x128xf32>
    %39 = arith.addf %37, %38 : vector<128x128xf32>
    %cst_45 = arith.constant dense<0xFF800000> : vector<128xf32>
    %40 = vector.multi_reduction <maximumf>, %39, %cst_45 [0] : vector<128x128xf32> to vector<128xf32>
    %41 = vector.shape_cast %40 : vector<128xf32> to vector<1x128xf32>
    %42 = vector.broadcast %41 : vector<1x128xf32> to vector<128x128xf32>
    %43 = arith.subf %39, %42 : vector<128x128xf32>
    %44 = math.exp %43 : vector<128x128xf32>
    %cst_46 = arith.constant dense<0.000000e+00> : vector<128xf32>
    %45 = vector.multi_reduction <add>, %44, %cst_46 [0] : vector<128x128xf32> to vector<128xf32>
    %46 = vector.shape_cast %45 : vector<128xf32> to vector<1x128xf32>
    %47 = tpu.reciprocal %46 : vector<1x128xf32> -> vector<1x128xf32>
    %c0_47 = arith.constant 0 : index
    %c0_48 = arith.constant 0 : index
    %c0_49 = arith.constant 0 : index
    %48 = vector.load %arg4[%c0_47, %c0_48, %c0_49] : memref<3x128x128xf32, #tpu.memory_space<vmem>>, vector<1x128x128xf32>
    %49 = vector.shape_cast %48 : vector<1x128x128xf32> to vector<128x128xf32>
    %50 = vector.broadcast %47 : vector<1x128xf32> to vector<128x128xf32>
    %51 = arith.mulf %44, %50 : vector<128x128xf32>
    %52 = vector.broadcast %2 : f32 to vector<128x128xf32>
    %53 = arith.mulf %52, %51 : vector<128x128xf32>
    %54 = arith.addf %49, %53 : vector<128x128xf32>
    %cst_50 = arith.constant dense<0.000000e+00> : vector<8x128xf32>
    %55 = tpu.matmul %17, %54, %cst_50 {dimension_numbers = #tpu.dot_dimension_numbers<[1], [0], [0], [1], [0, 0, 1, 1], [], []>} : vector<8x128xf32>, vector<128x128xf32>, vector<8x128xf32> -> vector<8x128xf32>
    %56 = vector.extract_strided_slice %7 {offsets = [8, 0], sizes = [8, 128], strides = [1, 1]} : vector<48x128xf32> to vector<8x128xf32>
    %57 = vector.extract_strided_slice %7 {offsets = [32, 0], sizes = [8, 128], strides = [1, 1]} : vector<48x128xf32> to vector<8x128xf32>
    %c64_51 = arith.constant 64 : index
    %c0_52 = arith.constant 0 : index
    %58 = vector.load %arg12[%c64_51, %c0_52] : memref<192x16xf32, #tpu.memory_space<vmem>>, vector<8x16xf32>
    %c0_53 = arith.constant 0 : index
    %c0_54 = arith.constant 0 : index
    %59 = vector.load %arg13[%c0_53, %c0_54] : memref<8x128xf32, #tpu.memory_space<vmem>>, vector<8x16xf32>
    tpu.vector_store %arg13[%c0_53, %c0_54], %58 {strides = array<i32>} : memref<8x128xf32, #tpu.memory_space<vmem>>, vector<8x16xf32>,
    %c72 = arith.constant 72 : index
    %c0_55 = arith.constant 0 : index
    %60 = vector.load %arg12[%c72, %c0_55] : memref<192x16xf32, #tpu.memory_space<vmem>>, vector<8x16xf32>
    %c0_56 = arith.constant 0 : index
    %c16_57 = arith.constant 16 : index
    %61 = vector.load %arg13[%c0_56, %c16_57] : memref<8x128xf32, #tpu.memory_space<vmem>>, vector<8x16xf32>
    tpu.vector_store %arg13[%c0_56, %c16_57], %60 {strides = array<i32>} : memref<8x128xf32, #tpu.memory_space<vmem>>, vector<8x16xf32>,
    %c80_58 = arith.constant 80 : index
    %c0_59 = arith.constant 0 : index
    %62 = vector.load %arg12[%c80_58, %c0_59] : memref<192x16xf32, #tpu.memory_space<vmem>>, vector<8x16xf32>
    %c0_60 = arith.constant 0 : index
    %c32_61 = arith.constant 32 : index
    %63 = vector.load %arg13[%c0_60, %c32_61] : memref<8x128xf32, #tpu.memory_space<vmem>>, vector<8x16xf32>
    tpu.vector_store %arg13[%c0_60, %c32_61], %62 {strides = array<i32>} : memref<8x128xf32, #tpu.memory_space<vmem>>, vector<8x16xf32>,
    %c88 = arith.constant 88 : index
    %c0_62 = arith.constant 0 : index
    %64 = vector.load %arg12[%c88, %c0_62] : memref<192x16xf32, #tpu.memory_space<vmem>>, vector<8x16xf32>
    %c0_63 = arith.constant 0 : index
    %c48_64 = arith.constant 48 : index
    %65 = vector.load %arg13[%c0_63, %c48_64] : memref<8x128xf32, #tpu.memory_space<vmem>>, vector<8x16xf32>
    tpu.vector_store %arg13[%c0_63, %c48_64], %64 {strides = array<i32>} : memref<8x128xf32, #tpu.memory_space<vmem>>, vector<8x16xf32>,
    %c96_65 = arith.constant 96 : index
    %c0_66 = arith.constant 0 : index
    %66 = vector.load %arg12[%c96_65, %c0_66] : memref<192x16xf32, #tpu.memory_space<vmem>>, vector<8x16xf32>
    %c0_67 = arith.constant 0 : index
    %c64_68 = arith.constant 64 : index
    %67 = vector.load %arg13[%c0_67, %c64_68] : memref<8x128xf32, #tpu.memory_space<vmem>>, vector<8x16xf32>
    tpu.vector_store %arg13[%c0_67, %c64_68], %66 {strides = array<i32>} : memref<8x128xf32, #tpu.memory_space<vmem>>, vector<8x16xf32>,
    %c104 = arith.constant 104 : index
    %c0_69 = arith.constant 0 : index
    %68 = vector.load %arg12[%c104, %c0_69] : memref<192x16xf32, #tpu.memory_space<vmem>>, vector<8x16xf32>
    %c0_70 = arith.constant 0 : index
    %c80_71 = arith.constant 80 : index
    %69 = vector.load %arg13[%c0_70, %c80_71] : memref<8x128xf32, #tpu.memory_space<vmem>>, vector<8x16xf32>
    tpu.vector_store %arg13[%c0_70, %c80_71], %68 {strides = array<i32>} : memref<8x128xf32, #tpu.memory_space<vmem>>, vector<8x16xf32>,
    %c112_72 = arith.constant 112 : index
    %c0_73 = arith.constant 0 : index
    %70 = vector.load %arg12[%c112_72, %c0_73] : memref<192x16xf32, #tpu.memory_space<vmem>>, vector<8x16xf32>
    %c0_74 = arith.constant 0 : index
    %c96_75 = arith.constant 96 : index
    %71 = vector.load %arg13[%c0_74, %c96_75] : memref<8x128xf32, #tpu.memory_space<vmem>>, vector<8x16xf32>
    tpu.vector_store %arg13[%c0_74, %c96_75], %70 {strides = array<i32>} : memref<8x128xf32, #tpu.memory_space<vmem>>, vector<8x16xf32>,
    %c120 = arith.constant 120 : index
    %c0_76 = arith.constant 0 : index
    %72 = vector.load %arg12[%c120, %c0_76] : memref<192x16xf32, #tpu.memory_space<vmem>>, vector<8x16xf32>
    %c0_77 = arith.constant 0 : index
    %c112_78 = arith.constant 112 : index
    %73 = vector.load %arg13[%c0_77, %c112_78] : memref<8x128xf32, #tpu.memory_space<vmem>>, vector<8x16xf32>
    tpu.vector_store %arg13[%c0_77, %c112_78], %72 {strides = array<i32>} : memref<8x128xf32, #tpu.memory_space<vmem>>, vector<8x16xf32>,
    %c0_79 = arith.constant 0 : index
    %c0_80 = arith.constant 0 : index
    %74 = vector.load %arg13[%c0_79, %c0_80] : memref<8x128xf32, #tpu.memory_space<vmem>>, vector<8x128xf32>
    %cst_81 = arith.constant dense<0.000000e+00> : vector<128x128xf32>
    %75 = tpu.matmul %56, %74, %cst_81 {dimension_numbers = #tpu.dot_dimension_numbers<[0], [0], [1], [1], [0, 1, 1, 1], [], []>} : vector<8x128xf32>, vector<8x128xf32>, vector<128x128xf32> -> vector<128x128xf32>
    %cst_82 = arith.constant 1.250000e-01 : f32
    %76 = vector.broadcast %cst_82 : f32 to vector<128x128xf32>
    %77 = arith.mulf %75, %76 : vector<128x128xf32>
    %c0_83 = arith.constant 0 : index
    %c0_84 = arith.constant 0 : index
    %78 = vector.load %arg5[%c0_83, %c0_84] : memref<128x128xf32, #tpu.memory_space<vmem>>, vector<128x128xf32>
    %79 = arith.addf %77, %78 : vector<128x128xf32>
    %cst_85 = arith.constant dense<0xFF800000> : vector<128xf32>
    %80 = vector.multi_reduction <maximumf>, %79, %cst_85 [0] : vector<128x128xf32> to vector<128xf32>
    %81 = vector.shape_cast %80 : vector<128xf32> to vector<1x128xf32>
    %82 = vector.broadcast %81 : vector<1x128xf32> to vector<128x128xf32>
    %83 = arith.subf %79, %82 : vector<128x128xf32>
    %84 = math.exp %83 : vector<128x128xf32>
    %cst_86 = arith.constant dense<0.000000e+00> : vector<128xf32>
    %85 = vector.multi_reduction <add>, %84, %cst_86 [0] : vector<128x128xf32> to vector<128xf32>
    %86 = vector.shape_cast %85 : vector<128xf32> to vector<1x128xf32>
    %87 = tpu.reciprocal %86 : vector<1x128xf32> -> vector<1x128xf32>
    %c1 = arith.constant 1 : index
    %c0_87 = arith.constant 0 : index
    %c0_88 = arith.constant 0 : index
    %88 = vector.load %arg4[%c1, %c0_87, %c0_88] : memref<3x128x128xf32, #tpu.memory_space<vmem>>, vector<1x128x128xf32>
    %89 = vector.shape_cast %88 : vector<1x128x128xf32> to vector<128x128xf32>
    %90 = vector.broadcast %87 : vector<1x128xf32> to vector<128x128xf32>
    %91 = arith.mulf %84, %90 : vector<128x128xf32>
    %92 = vector.broadcast %2 : f32 to vector<128x128xf32>
    %93 = arith.mulf %92, %91 : vector<128x128xf32>
    %94 = arith.addf %89, %93 : vector<128x128xf32>
    %cst_89 = arith.constant dense<0.000000e+00> : vector<8x128xf32>
    %95 = tpu.matmul %57, %94, %cst_89 {dimension_numbers = #tpu.dot_dimension_numbers<[1], [0], [0], [1], [0, 0, 1, 1], [], []>} : vector<8x128xf32>, vector<128x128xf32>, vector<8x128xf32> -> vector<8x128xf32>
    %96 = arith.addf %55, %95 : vector<8x128xf32>
    %97 = vector.extract_strided_slice %7 {offsets = [16, 0], sizes = [8, 128], strides = [1, 1]} : vector<48x128xf32> to vector<8x128xf32>
    %98 = vector.extract_strided_slice %7 {offsets = [40, 0], sizes = [8, 128], strides = [1, 1]} : vector<48x128xf32> to vector<8x128xf32>
    %c128 = arith.constant 128 : index
    %c0_90 = arith.constant 0 : index
    %99 = vector.load %arg12[%c128, %c0_90] : memref<192x16xf32, #tpu.memory_space<vmem>>, vector<8x16xf32>
    %c0_91 = arith.constant 0 : index
    %c0_92 = arith.constant 0 : index
    %100 = vector.load %arg13[%c0_91, %c0_92] : memref<8x128xf32, #tpu.memory_space<vmem>>, vector<8x16xf32>
    tpu.vector_store %arg13[%c0_91, %c0_92], %99 {strides = array<i32>} : memref<8x128xf32, #tpu.memory_space<vmem>>, vector<8x16xf32>,
    %c136 = arith.constant 136 : index
    %c0_93 = arith.constant 0 : index
    %101 = vector.load %arg12[%c136, %c0_93] : memref<192x16xf32, #tpu.memory_space<vmem>>, vector<8x16xf32>
    %c0_94 = arith.constant 0 : index
    %c16_95 = arith.constant 16 : index
    %102 = vector.load %arg13[%c0_94, %c16_95] : memref<8x128xf32, #tpu.memory_space<vmem>>, vector<8x16xf32>
    tpu.vector_store %arg13[%c0_94, %c16_95], %101 {strides = array<i32>} : memref<8x128xf32, #tpu.memory_space<vmem>>, vector<8x16xf32>,
    %c144 = arith.constant 144 : index
    %c0_96 = arith.constant 0 : index
    %103 = vector.load %arg12[%c144, %c0_96] : memref<192x16xf32, #tpu.memory_space<vmem>>, vector<8x16xf32>
    %c0_97 = arith.constant 0 : index
    %c32_98 = arith.constant 32 : index
    %104 = vector.load %arg13[%c0_97, %c32_98] : memref<8x128xf32, #tpu.memory_space<vmem>>, vector<8x16xf32>
    tpu.vector_store %arg13[%c0_97, %c32_98], %103 {strides = array<i32>} : memref<8x128xf32, #tpu.memory_space<vmem>>, vector<8x16xf32>,
    %c152 = arith.constant 152 : index
    %c0_99 = arith.constant 0 : index
    %105 = vector.load %arg12[%c152, %c0_99] : memref<192x16xf32, #tpu.memory_space<vmem>>, vector<8x16xf32>
    %c0_100 = arith.constant 0 : index
    %c48_101 = arith.constant 48 : index
    %106 = vector.load %arg13[%c0_100, %c48_101] : memref<8x128xf32, #tpu.memory_space<vmem>>, vector<8x16xf32>
    tpu.vector_store %arg13[%c0_100, %c48_101], %105 {strides = array<i32>} : memref<8x128xf32, #tpu.memory_space<vmem>>, vector<8x16xf32>,
    %c160 = arith.constant 160 : index
    %c0_102 = arith.constant 0 : index
    %107 = vector.load %arg12[%c160, %c0_102] : memref<192x16xf32, #tpu.memory_space<vmem>>, vector<8x16xf32>
    %c0_103 = arith.constant 0 : index
    %c64_104 = arith.constant 64 : index
    %108 = vector.load %arg13[%c0_103, %c64_104] : memref<8x128xf32, #tpu.memory_space<vmem>>, vector<8x16xf32>
    tpu.vector_store %arg13[%c0_103, %c64_104], %107 {strides = array<i32>} : memref<8x128xf32, #tpu.memory_space<vmem>>, vector<8x16xf32>,
    %c168 = arith.constant 168 : index
    %c0_105 = arith.constant 0 : index
    %109 = vector.load %arg12[%c168, %c0_105] : memref<192x16xf32, #tpu.memory_space<vmem>>, vector<8x16xf32>
    %c0_106 = arith.constant 0 : index
    %c80_107 = arith.constant 80 : index
    %110 = vector.load %arg13[%c0_106, %c80_107] : memref<8x128xf32, #tpu.memory_space<vmem>>, vector<8x16xf32>
    tpu.vector_store %arg13[%c0_106, %c80_107], %109 {strides = array<i32>} : memref<8x128xf32, #tpu.memory_space<vmem>>, vector<8x16xf32>,
    %c176 = arith.constant 176 : index
    %c0_108 = arith.constant 0 : index
    %111 = vector.load %arg12[%c176, %c0_108] : memref<192x16xf32, #tpu.memory_space<vmem>>, vector<8x16xf32>
    %c0_109 = arith.constant 0 : index
    %c96_110 = arith.constant 96 : index
    %112 = vector.load %arg13[%c0_109, %c96_110] : memref<8x128xf32, #tpu.memory_space<vmem>>, vector<8x16xf32>
    tpu.vector_store %arg13[%c0_109, %c96_110], %111 {strides = array<i32>} : memref<8x128xf32, #tpu.memory_space<vmem>>, vector<8x16xf32>,
    %c184 = arith.constant 184 : index
    %c0_111 = arith.constant 0 : index
    %113 = vector.load %arg12[%c184, %c0_111] : memref<192x16xf32, #tpu.memory_space<vmem>>, vector<8x16xf32>
    %c0_112 = arith.constant 0 : index
    %c112_113 = arith.constant 112 : index
    %114 = vector.load %arg13[%c0_112, %c112_113] : memref<8x128xf32, #tpu.memory_space<vmem>>, vector<8x16xf32>
    tpu.vector_store %arg13[%c0_112, %c112_113], %113 {strides = array<i32>} : memref<8x128xf32, #tpu.memory_space<vmem>>, vector<8x16xf32>,
    %c0_114 = arith.constant 0 : index
    %c0_115 = arith.constant 0 : index
    %115 = vector.load %arg13[%c0_114, %c0_115] : memref<8x128xf32, #tpu.memory_space<vmem>>, vector<8x128xf32>
    %cst_116 = arith.constant dense<0.000000e+00> : vector<128x128xf32>
    %116 = tpu.matmul %97, %115, %cst_116 {dimension_numbers = #tpu.dot_dimension_numbers<[0], [0], [1], [1], [0, 1, 1, 1], [], []>} : vector<8x128xf32>, vector<8x128xf32>, vector<128x128xf32> -> vector<128x128xf32>
    %cst_117 = arith.constant 1.250000e-01 : f32
    %117 = vector.broadcast %cst_117 : f32 to vector<128x128xf32>
    %118 = arith.mulf %116, %117 : vector<128x128xf32>
    %c0_118 = arith.constant 0 : index
    %c0_119 = arith.constant 0 : index
    %119 = vector.load %arg5[%c0_118, %c0_119] : memref<128x128xf32, #tpu.memory_space<vmem>>, vector<128x128xf32>
    %120 = arith.addf %118, %119 : vector<128x128xf32>
    %cst_120 = arith.constant dense<0xFF800000> : vector<128xf32>
    %121 = vector.multi_reduction <maximumf>, %120, %cst_120 [0] : vector<128x128xf32> to vector<128xf32>
    %122 = vector.shape_cast %121 : vector<128xf32> to vector<1x128xf32>
    %123 = vector.broadcast %122 : vector<1x128xf32> to vector<128x128xf32>
    %124 = arith.subf %120, %123 : vector<128x128xf32>
    %125 = math.exp %124 : vector<128x128xf32>
    %cst_121 = arith.constant dense<0.000000e+00> : vector<128xf32>
    %126 = vector.multi_reduction <add>, %125, %cst_121 [0] : vector<128x128xf32> to vector<128xf32>
    %127 = vector.shape_cast %126 : vector<128xf32> to vector<1x128xf32>
    %128 = tpu.reciprocal %127 : vector<1x128xf32> -> vector<1x128xf32>
    %c2 = arith.constant 2 : index
    %c0_122 = arith.constant 0 : index
    %c0_123 = arith.constant 0 : index
    %129 = vector.load %arg4[%c2, %c0_122, %c0_123] : memref<3x128x128xf32, #tpu.memory_space<vmem>>, vector<1x128x128xf32>
    %130 = vector.shape_cast %129 : vector<1x128x128xf32> to vector<128x128xf32>
    %131 = vector.broadcast %128 : vector<1x128xf32> to vector<128x128xf32>
    %132 = arith.mulf %125, %131 : vector<128x128xf32>
    %133 = vector.broadcast %2 : f32 to vector<128x128xf32>
    %134 = arith.mulf %133, %132 : vector<128x128xf32>
    %135 = arith.addf %130, %134 : vector<128x128xf32>
    %cst_124 = arith.constant dense<0.000000e+00> : vector<8x128xf32>
    %136 = tpu.matmul %98, %135, %cst_124 {dimension_numbers = #tpu.dot_dimension_numbers<[1], [0], [0], [1], [0, 0, 1, 1], [], []>} : vector<8x128xf32>, vector<128x128xf32>, vector<8x128xf32> -> vector<8x128xf32>
    %137 = arith.addf %96, %136 : vector<8x128xf32>
    %c0_125 = arith.constant 0 : index
    %c0_126 = arith.constant 0 : index
    %138 = vector.load %arg10[%c0_125, %c0_126] : memref<8x1xf32, #tpu.memory_space<vmem>>, vector<8x1xf32>
    %139 = vector.broadcast %138 : vector<8x1xf32> to vector<8x128xf32>
    %140 = arith.addf %137, %139 : vector<8x128xf32>
    %c0_127 = arith.constant 0 : index
    %c0_128 = arith.constant 0 : index
    %c0_129 = arith.constant 0 : index
    %141 = vector.load %arg11[%c0_127, %c0_128, %c0_129] : memref<1x8x128xf32, #tpu.memory_space<vmem>>, vector<1x8x128xf32>
    %142 = vector.shape_cast %141 : vector<1x8x128xf32> to vector<8x128xf32>
    %143 = vector.shape_cast %140 : vector<8x128xf32> to vector<1x8x128xf32>
    tpu.vector_store %arg11[%c0_127, %c0_128, %c0_129], %143 {strides = array<i32>} : memref<1x8x128xf32, #tpu.memory_space<vmem>>, vector<1x8x128xf32>,
    return
  }
  func.func @transform_0(%arg0: i32) -> (i32, i32) {
    %c0_i32 = arith.constant 0 : i32
    %c0_i32_0 = arith.constant 0 : i32
    %c0_i32_1 = arith.constant 0 : i32
    return %c0_i32, %c0_i32_0 : i32, i32
  }
  func.func @transform_1(%arg0: i32) -> (i32, i32, i32) {
    %c0_i32 = arith.constant 0 : i32
    %c0_i32_0 = arith.constant 0 : i32
    %c0_i32_1 = arith.constant 0 : i32
    return %arg0, %c0_i32, %c0_i32_0 : i32, i32, i32
  }
  func.func @transform_2(%arg0: i32) -> (i32, i32, i32) {
    %c0_i32 = arith.constant 0 : i32
    %c0_i32_0 = arith.constant 0 : i32
    %c0_i32_1 = arith.constant 0 : i32
    return %arg0, %c0_i32, %c0_i32_0 : i32, i32, i32
  }
  func.func @transform_3(%arg0: i32) -> (i32, i32, i32) {
    %c0_i32 = arith.constant 0 : i32
    %c0_i32_0 = arith.constant 0 : i32
    %c0_i32_1 = arith.constant 0 : i32
    %c0_i32_2 = arith.constant 0 : i32
    return %c0_i32, %c0_i32_0, %c0_i32_1 : i32, i32, i32
  }
  func.func @transform_4(%arg0: i32) -> (i32, i32) {
    %c0_i32 = arith.constant 0 : i32
    %c0_i32_0 = arith.constant 0 : i32
    %c0_i32_1 = arith.constant 0 : i32
    return %c0_i32, %c0_i32_0 : i32, i32
  }
  func.func @transform_5(%arg0: i32) -> (i32, i32) {
    %c0_i32 = arith.constant 0 : i32
    %c0_i32_0 = arith.constant 0 : i32
    %c0_i32_1 = arith.constant 0 : i32
    return %c0_i32, %c0_i32_0 : i32, i32
  }
  func.func @transform_6(%arg0: i32) -> (i32, i32) {
    %c0_i32 = arith.constant 0 : i32
    %c0_i32_0 = arith.constant 0 : i32
    %c0_i32_1 = arith.constant 0 : i32
    return %c0_i32, %c0_i32_0 : i32, i32
  }
  func.func @transform_7(%arg0: i32) -> (i32, i32) {
    %c0_i32 = arith.constant 0 : i32
    %c0_i32_0 = arith.constant 0 : i32
    %c0_i32_1 = arith.constant 0 : i32
    return %c0_i32, %c0_i32_0 : i32, i32
  }
  func.func @transform_8(%arg0: i32) -> (i32, i32) {
    %c0_i32 = arith.constant 0 : i32
    %c0_i32_0 = arith.constant 0 : i32
    %c0_i32_1 = arith.constant 0 : i32
    return %c0_i32, %c0_i32_0 : i32, i32
  }
  func.func @transform_9(%arg0: i32) -> (i32, i32) {
    %c0_i32 = arith.constant 0 : i32
    %c0_i32_0 = arith.constant 0 : i32
    %c0_i32_1 = arith.constant 0 : i32
    return %c0_i32, %c0_i32_0 : i32, i32
  }
  func.func @transform_10(%arg0: i32) -> (i32, i32, i32) {
    %c0_i32 = arith.constant 0 : i32
    %c0_i32_0 = arith.constant 0 : i32
    %c0_i32_1 = arith.constant 0 : i32
    return %arg0, %c0_i32, %c0_i32_0 : i32, i32, i32
  }
}

</mosaic_0001>

<llo_original>
// kernel: tpu_custom_call.1
$region0: #{tpu_custom_call.1}
  #allocation0 [shape = 'u32[]', space=smem, size = 0x4, offset = 0x4, fixed_abs, tag = 'smem constant byte address 0x4 - core index']
  #allocation1 [shape = 'u32[144,128]{1,0:T(1,128)}', space=vmem, size = 0x12000, scoped, tag = 'internal scratch']
  #allocation2 [shape = 'f32[192,16]{1,0:T(8,128)}', space=vmem, size = 0x18000, scoped, tag = 'scratch operand']
  #allocation3 [shape = 'f32[8,128]{1,0:T(8,128)}', space=vmem, size = 0x1000, scoped, tag = 'scratch operand']
  #allocation4 [shape = 'f32[1,1]{1,0:T(1,128)S(6)}', space=smem, size = 0x200, scoped, tag = 'scoped memory for tpu_custom_call.1']
  %s0 = inlined_call_operand.<no memory space> [shape: f32[1,1], index: 0, kind: input, shape index: {}]
  %s1 = inlined_call_operand.vmem [shape: f32[2,4,128], index: 1, kind: input, shape index: {}]
  %s2 = inlined_call_operand.vmem [shape: f32[2,32,16], index: 2, kind: input, shape index: {}]
  %s3 = inlined_call_operand.vmem [shape: f32[3,128,128], index: 3, kind: input, shape index: {}]
  %s4 = inlined_call_operand.vmem [shape: f32[128,128], index: 4, kind: input, shape index: {}]
  %s5 = inlined_call_operand.vmem [shape: f32[48,4], index: 5, kind: input, shape index: {}]
  %s6 = inlined_call_operand.vmem [shape: f32[48,1], index: 6, kind: input, shape index: {}]
  %s7 = inlined_call_operand.vmem [shape: f32[192,32], index: 7, kind: input, shape index: {}]
  %s8 = inlined_call_operand.vmem [shape: f32[192,1], index: 8, kind: input, shape index: {}]
  %s9 = inlined_call_operand.vmem [shape: f32[8,1], index: 9, kind: input, shape index: {}]
  %s10 = inlined_call_operand.hbm [shape: f32[2,8,128], index: 10, kind: output, shape index: {}]
  %s11 = sld [smem:[#allocation0]]
  $region73: #{tpu_custom_call.1} parent=0
    _
  %s13 = ssub.s32 1, %s11
  %s14 = scalar_select 0, %s13, %s11
  %15 = sst [smem:[#allocation4]] %s0
  $region1: #{tpu_custom_call.1} parent=0
    #allocation5 [shape = 'u8[8192]{0}', space=vmem, size = 0x2000, scoped, tag = 'output window, operand 0']
    #allocation6 [shape = 's32[2]{0}', space=sflag, size = 0x8, scoped, tag = 'scoped memory for tpu_custom_call.1']
    %16 = vsyncpa [#allocation6], 0
    %s17 = scalar_lea.sflag [#allocation6], 1
    %18 = vsyncpa %s17, 0
    loop: start=0, step=1, limit=4
    $region2: #{tpu_custom_call.1} parent=1 // loop_pre_header
      _
    $region3: #{tpu_custom_call.1} parent=1 // loop_header
      %s20 = sphi 0, %s24
      %p21 = scmp.ge.s32.totalorder %s20, 4
      %s28 = sphi 0, %s28
      %s30 = sphi 0, %s28
      %s31 = sphi 0, %s30
      %s45 = sphi 0, %s31
      %s51 = sphi 0, %s53
      %s54 = sphi 0, %s51
      %s55 = sphi 0, %s54
      %s71 = sphi 0, %s55
      %s77 = sphi 0, %s79
      %s80 = sphi 0, %s77
      %s81 = sphi 0, %s80
      %s97 = sphi 0, %s81
      %s101 = sphi 0, %s101
      %s103 = sphi 0, %s101
      %s104 = sphi 0, %s103
      %s118 = sphi 0, %s104
      %s122 = sphi 0, %s122
      %s124 = sphi 0, %s122
      %s125 = sphi 0, %s124
      %s139 = sphi 0, %s125
      %s143 = sphi 0, %s143
      %s145 = sphi 0, %s143
      %s146 = sphi 0, %s145
      %s160 = sphi 0, %s146
      %s164 = sphi 0, %s164
      %s166 = sphi 0, %s164
      %s167 = sphi 0, %s166
      %s181 = sphi 0, %s167
      %s185 = sphi 0, %s185
      %s187 = sphi 0, %s185
      %s188 = sphi 0, %s187
      %s202 = sphi 0, %s188
      %s206 = sphi 0, %s206
      %s208 = sphi 0, %s206
      %s209 = sphi 0, %s208
      %s223 = sphi 0, %s209
      %s227 = sphi 0, %s227
      %s229 = sphi 0, %s227
      %s230 = sphi 0, %s229
      %s244 = sphi 0, %s230
      %s250 = sphi 0, %s252
      %s253 = sphi 0, %s250
      %s254 = sphi 0, %s253
      %s270 = sphi 0, %s254
    $region4: #{tpu_custom_call.1} parent=1 // loop_header_branch
      %23 = sbr.rel (%p21) target = $region8
    $region5: #{tpu_custom_call.1} parent=1 // loop_body
      %s25 = ssub.s32 %s20, 1
      %s26 = ssub.s32 %s20, 2
      %s27 = sadd.s32 %s20, 1
      %s29 = sadd.s32 %s28, 1
      %p32 = scmp.eq.s32.totalorder %s20, 1
      %p33 = scmp.ne.s32.totalorder %s28, %s30
      %p34 = scmp.eq.s32.totalorder %s20, 0
      %p35 = por %p33, %p34
      %p36 = scmp.ne.s32.totalorder %s28, %s30
      %p37 = scmp.eq.s32.totalorder %s25, 1
      %p38 = por %p36, %p37
      %p39 = scmp.ne.s32.totalorder %s30, %s31
      %p40 = scmp.eq.s32.totalorder %s25, 0
      %p41 = por %p39, %p40
      %p42 = scmp.ne.s32.totalorder %s30, %s31
      %p43 = scmp.eq.s32.totalorder %s26, 1
      %p44 = por %p42, %p43
      %p46 = scmp.ne.s32.totalorder %s31, %s45
      %p47 = scmp.eq.s32.totalorder %s26, 0
      %p48 = por %p46, %p47
      %s49 = ssub.s32 %s20, %s27
      %p50 = scmp.eq.s32.totalorder %s49, 0
      %s52 = sadd.s32 %s51, 1
      %s53 = scalar_select %p50, %s51, %s52
      %p56 = pneg %p50
      %p57 = scmp.eq.s32.totalorder %s20, 1
      %p58 = por %p56, %p57
      %p59 = scmp.ne.s32.totalorder %s51, %s54
      %p60 = scmp.eq.s32.totalorder %s20, 0
      %p61 = por %p59, %p60
      %p62 = scmp.ne.s32.totalorder %s51, %s54
      %p63 = scmp.eq.s32.totalorder %s25, 1
      %p64 = por %p62, %p63
      %p65 = scmp.ne.s32.totalorder %s54, %s55
      %p66 = scmp.eq.s32.totalorder %s25, 0
      %p67 = por %p65, %p66
      %p68 = scmp.ne.s32.totalorder %s54, %s55
      %p69 = scmp.eq.s32.totalorder %s26, 1
      %p70 = por %p68, %p69
      %p72 = scmp.ne.s32.totalorder %s55, %s71
      %p73 = scmp.eq.s32.totalorder %s26, 0
      %p74 = por %p72, %p73
      %s75 = ssub.s32 %s20, %s27
      %p76 = scmp.eq.s32.totalorder %s75, 0
      %s78 = sadd.s32 %s77, 1
      %s79 = scalar_select %p76, %s77, %s78
      %p82 = pneg %p76
      %p83 = scmp.eq.s32.totalorder %s20, 1
      %p84 = por %p82, %p83
      %p85 = scmp.ne.s32.totalorder %s77, %s80
      %p86 = scmp.eq.s32.totalorder %s20, 0
      %p87 = por %p85, %p86
      %p88 = scmp.ne.s32.totalorder %s77, %s80
      %p89 = scmp.eq.s32.totalorder %s25, 1
      %p90 = por %p88, %p89
      %p91 = scmp.ne.s32.totalorder %s80, %s81
      %p92 = scmp.eq.s32.totalorder %s25, 0
      %p93 = por %p91, %p92
      %p94 = scmp.ne.s32.totalorder %s80, %s81
      %p95 = scmp.eq.s32.totalorder %s26, 1
      %p96 = por %p94, %p95
      %p98 = scmp.ne.s32.totalorder %s81, %s97
      %p99 = scmp.eq.s32.totalorder %s26, 0
      %p100 = por %p98, %p99
      %s102 = sadd.s32 %s101, 1
      %p105 = scmp.eq.s32.totalorder %s20, 1
      %p106 = scmp.ne.s32.totalorder %s101, %s103
      %p107 = scmp.eq.s32.totalorder %s20, 0
      %p108 = por %p106, %p107
      %p109 = scmp.ne.s32.totalorder %s101, %s103
      %p110 = scmp.eq.s32.totalorder %s25, 1
      %p111 = por %p109, %p110
      %p112 = scmp.ne.s32.totalorder %s103, %s104
      %p113 = scmp.eq.s32.totalorder %s25, 0
      %p114 = por %p112, %p113
      %p115 = scmp.ne.s32.totalorder %s103, %s104
      %p116 = scmp.eq.s32.totalorder %s26, 1
      %p117 = por %p115, %p116
      %p119 = scmp.ne.s32.totalorder %s104, %s118
      %p120 = scmp.eq.s32.totalorder %s26, 0
      %p121 = por %p119, %p120
      %s123 = sadd.s32 %s122, 1
      %p126 = scmp.eq.s32.totalorder %s20, 1
      %p127 = scmp.ne.s32.totalorder %s122, %s124
      %p128 = scmp.eq.s32.totalorder %s20, 0
      %p129 = por %p127, %p128
      %p130 = scmp.ne.s32.totalorder %s122, %s124
      %p131 = scmp.eq.s32.totalorder %s25, 1
      %p132 = por %p130, %p131
      %p133 = scmp.ne.s32.totalorder %s124, %s125
      %p134 = scmp.eq.s32.totalorder %s25, 0
      %p135 = por %p133, %p134
      %p136 = scmp.ne.s32.totalorder %s124, %s125
      %p137 = scmp.eq.s32.totalorder %s26, 1
      %p138 = por %p136, %p137
      %p140 = scmp.ne.s32.totalorder %s125, %s139
      %p141 = scmp.eq.s32.totalorder %s26, 0
      %p142 = por %p140, %p141
      %s144 = sadd.s32 %s143, 1
      %p147 = scmp.eq.s32.totalorder %s20, 1
      %p148 = scmp.ne.s32.totalorder %s143, %s145
      %p149 = scmp.eq.s32.totalorder %s20, 0
      %p150 = por %p148, %p149
      %p151 = scmp.ne.s32.totalorder %s143, %s145
      %p152 = scmp.eq.s32.totalorder %s25, 1
      %p153 = por %p151, %p152
      %p154 = scmp.ne.s32.totalorder %s145, %s146
      %p155 = scmp.eq.s32.totalorder %s25, 0
      %p156 = por %p154, %p155
      %p157 = scmp.ne.s32.totalorder %s145, %s146
      %p158 = scmp.eq.s32.totalorder %s26, 1
      %p159 = por %p157, %p158
      %p161 = scmp.ne.s32.totalorder %s146, %s160
      %p162 = scmp.eq.s32.totalorder %s26, 0
      %p163 = por %p161, %p162
      %s165 = sadd.s32 %s164, 1
      %p168 = scmp.eq.s32.totalorder %s20, 1
      %p169 = scmp.ne.s32.totalorder %s164, %s166
      %p170 = scmp.eq.s32.totalorder %s20, 0
      %p171 = por %p169, %p170
      %p172 = scmp.ne.s32.totalorder %s164, %s166
      %p173 = scmp.eq.s32.totalorder %s25, 1
      %p174 = por %p172, %p173
      %p175 = scmp.ne.s32.totalorder %s166, %s167
      %p176 = scmp.eq.s32.totalorder %s25, 0
      %p177 = por %p175, %p176
      %p178 = scmp.ne.s32.totalorder %s166, %s167
      %p179 = scmp.eq.s32.totalorder %s26, 1
      %p180 = por %p178, %p179
      %p182 = scmp.ne.s32.totalorder %s167, %s181
      %p183 = scmp.eq.s32.totalorder %s26, 0
      %p184 = por %p182, %p183
      %s186 = sadd.s32 %s185, 1
      %p189 = scmp.eq.s32.totalorder %s20, 1
      %p190 = scmp.ne.s32.totalorder %s185, %s187
      %p191 = scmp.eq.s32.totalorder %s20, 0
      %p192 = por %p190, %p191
      %p193 = scmp.ne.s32.totalorder %s185, %s187
      %p194 = scmp.eq.s32.totalorder %s25, 1
      %p195 = por %p193, %p194
      %p196 = scmp.ne.s32.totalorder %s187, %s188
      %p197 = scmp.eq.s32.totalorder %s25, 0
      %p198 = por %p196, %p197
      %p199 = scmp.ne.s32.totalorder %s187, %s188
      %p200 = scmp.eq.s32.totalorder %s26, 1
      %p201 = por %p199, %p200
      %p203 = scmp.ne.s32.totalorder %s188, %s202
      %p204 = scmp.eq.s32.totalorder %s26, 0
      %p205 = por %p203, %p204
      %s207 = sadd.s32 %s206, 1
      %p210 = scmp.eq.s32.totalorder %s20, 1
      %p211 = scmp.ne.s32.totalorder %s206, %s208
      %p212 = scmp.eq.s32.totalorder %s20, 0
      %p213 = por %p211, %p212
      %p214 = scmp.ne.s32.totalorder %s206, %s208
      %p215 = scmp.eq.s32.totalorder %s25, 1
      %p216 = por %p214, %p215
      %p217 = scmp.ne.s32.totalorder %s208, %s209
      %p218 = scmp.eq.s32.totalorder %s25, 0
      %p219 = por %p217, %p218
      %p220 = scmp.ne.s32.totalorder %s208, %s209
      %p221 = scmp.eq.s32.totalorder %s26, 1
      %p222 = por %p220, %p221
      %p224 = scmp.ne.s32.totalorder %s209, %s223
      %p225 = scmp.eq.s32.totalorder %s26, 0
      %p226 = por %p224, %p225
      %s228 = sadd.s32 %s227, 1
      %p231 = scmp.eq.s32.totalorder %s20, 1
      %p232 = scmp.ne.s32.totalorder %s227, %s229
      %p233 = scmp.eq.s32.totalorder %s20, 0
      %p234 = por %p232, %p233
      %p235 = scmp.ne.s32.totalorder %s227, %s229
      %p236 = scmp.eq.s32.totalorder %s25, 1
      %p237 = por %p235, %p236
      %p238 = scmp.ne.s32.totalorder %s229, %s230
      %p239 = scmp.eq.s32.totalorder %s25, 0
      %p240 = por %p238, %p239
      %p241 = scmp.ne.s32.totalorder %s229, %s230
      %p242 = scmp.eq.s32.totalorder %s26, 1
      %p243 = por %p241, %p242
      %p245 = scmp.ne.s32.totalorder %s230, %s244
      %p246 = scmp.eq.s32.totalorder %s26, 0
      %p247 = por %p245, %p246
      %s248 = ssub.s32 %s20, %s27
      %p249 = scmp.eq.s32.totalorder %s248, 0
      %s251 = sadd.s32 %s250, 1
      %s252 = scalar_select %p249, %s250, %s251
      %p255 = pneg %p249
      %p256 = scmp.eq.s32.totalorder %s20, 1
      %p257 = por %p255, %p256
      %p258 = scmp.ne.s32.totalorder %s250, %s253
      %p259 = scmp.eq.s32.totalorder %s20, 0
      %p260 = por %p258, %p259
      %p261 = scmp.ne.s32.totalorder %s250, %s253
      %p262 = scmp.eq.s32.totalorder %s25, 1
      %p263 = por %p261, %p262
      %p264 = scmp.ne.s32.totalorder %s253, %s254
      %p265 = scmp.eq.s32.totalorder %s25, 0
      %p266 = por %p264, %p265
      %p267 = scmp.ne.s32.totalorder %s253, %s254
      %p268 = scmp.eq.s32.totalorder %s26, 1
      %p269 = por %p267, %p268
      %p271 = scmp.ne.s32.totalorder %s254, %s270
      %p272 = scmp.eq.s32.totalorder %s26, 0
      %p273 = por %p271, %p272
      %p274 = scmp.le.s32.totalorder 1, %s20
      %p275 = scmp.lt.s32.totalorder %s20, 3
      %p276 = pnand %p274, %p275
      %p277 = pneg %p276
      // Predicated region
      $region9: #{tpu_custom_call.1} parent=5 // pred_check
        _
      $region10: #{tpu_custom_call.1} parent=5 // pred_check_branch
        %279 = sbr.rel (%p276) target = $region12
      $region11: #{tpu_custom_call.1} parent=5 // pred_region
        %s280 = ssub.s32 %s20, 1
        // Predicated region
        $region13: #{tpu_custom_call.1} parent=11 // pred_check
          %p281 = pneg %p41
        $region14: #{tpu_custom_call.1} parent=11 // pred_check_branch
          %283 = sbr.rel (%p281) target = $region16
        $region15: #{tpu_custom_call.1} parent=11 // pred_region
          _
        $region16: #{tpu_custom_call.1} parent=11 // pred_fallthru
          _
        // Predicated region
        $region17: #{tpu_custom_call.1} parent=11 // pred_check
          %p284 = pneg %p114
        $region18: #{tpu_custom_call.1} parent=11 // pred_check_branch
          %286 = sbr.rel (%p284) target = $region20
        $region19: #{tpu_custom_call.1} parent=11 // pred_region
          _
        $region20: #{tpu_custom_call.1} parent=11 // pred_fallthru
          _
        // Predicated region
        $region21: #{tpu_custom_call.1} parent=11 // pred_check
          %p287 = pneg %p135
        $region22: #{tpu_custom_call.1} parent=11 // pred_check_branch
          %289 = sbr.rel (%p287) target = $region24
        $region23: #{tpu_custom_call.1} parent=11 // pred_region
          _
        $region24: #{tpu_custom_call.1} parent=11 // pred_fallthru
          _
        // Predicated region
        $region25: #{tpu_custom_call.1} parent=11 // pred_check
          %p290 = pneg %p156
        $region26: #{tpu_custom_call.1} parent=11 // pred_check_branch
          %292 = sbr.rel (%p290) target = $region28
        $region27: #{tpu_custom_call.1} parent=11 // pred_region
          _
        $region28: #{tpu_custom_call.1} parent=11 // pred_fallthru
          _
        // Predicated region
        $region29: #{tpu_custom_call.1} parent=11 // pred_check
          %p293 = pneg %p177
        $region30: #{tpu_custom_call.1} parent=11 // pred_check_branch
          %295 = sbr.rel (%p293) target = $region32
        $region31: #{tpu_custom_call.1} parent=11 // pred_region
          _
        $region32: #{tpu_custom_call.1} parent=11 // pred_fallthru
          _
        // Predicated region
        $region33: #{tpu_custom_call.1} parent=11 // pred_check
          %p296 = pneg %p198
        $region34: #{tpu_custom_call.1} parent=11 // pred_check_branch
          %298 = sbr.rel (%p296) target = $region36
        $region35: #{tpu_custom_call.1} parent=11 // pred_region
          _
        $region36: #{tpu_custom_call.1} parent=11 // pred_fallthru
          _
        // Predicated region
        $region37: #{tpu_custom_call.1} parent=11 // pred_check
          %p299 = pneg %p219
        $region38: #{tpu_custom_call.1} parent=11 // pred_check_branch
          %301 = sbr.rel (%p299) target = $region40
        $region39: #{tpu_custom_call.1} parent=11 // pred_region
          _
        $region40: #{tpu_custom_call.1} parent=11 // pred_fallthru
          _
        // Predicated region
        $region41: #{tpu_custom_call.1} parent=11 // pred_check
          %p302 = pneg %p240
        $region42: #{tpu_custom_call.1} parent=11 // pred_check_branch
          %304 = sbr.rel (%p302) target = $region44
        $region43: #{tpu_custom_call.1} parent=11 // pred_region
          _
        $region44: #{tpu_custom_call.1} parent=11 // pred_fallthru
          _
      $region12: #{tpu_custom_call.1} parent=5 // pred_fallthru
        _
      %p305 = scmp.lt.s32.totalorder %s20, 2
      // Predicated region
      $region45: #{tpu_custom_call.1} parent=5 // pred_check
        %p306 = pneg %p305
      $region46: #{tpu_custom_call.1} parent=5 // pred_check_branch
        %308 = sbr.rel (%p306) target = $region48
      $region47: #{tpu_custom_call.1} parent=5 // pred_region
        // Predicated region
        $region49: #{tpu_custom_call.1} parent=47 // pred_check
          %p309 = pneg %p61
        $region50: #{tpu_custom_call.1} parent=47 // pred_check_branch
          %311 = sbr.rel (%p309) target = $region52
        $region51: #{tpu_custom_call.1} parent=47 // pred_region
          %p312 = scmp.lt.s32.totalorder %s20, 1
          %s313 = scalar_select %p312, %s20, 1
          %s314 = smul.addr %s313, 4
          %s315 = scalar_lea.vmem %s1, %s314
        $region52: #{tpu_custom_call.1} parent=47 // pred_fallthru
          _
        // Predicated region
        $region53: #{tpu_custom_call.1} parent=47 // pred_check
          %p316 = pneg %p87
        $region54: #{tpu_custom_call.1} parent=47 // pred_check_branch
          %318 = sbr.rel (%p316) target = $region56
        $region55: #{tpu_custom_call.1} parent=47 // pred_region
          %p319 = scmp.lt.s32.totalorder %s20, 1
          %s320 = scalar_select %p319, %s20, 1
          %s321 = smul.addr %s320, 4
          %s322 = smul.addr %s321, 8
          %s323 = scalar_lea.vmem %s2, %s322
        $region56: #{tpu_custom_call.1} parent=47 // pred_fallthru
          _
      $region48: #{tpu_custom_call.1} parent=5 // pred_fallthru
        _
      %p324 = scmp.le.s32.totalorder 1, %s20
      %p325 = scmp.lt.s32.totalorder %s20, 3
      %p326 = pnand %p324, %p325
      %p327 = pneg %p326
      // Predicated region
      $region57: #{tpu_custom_call.1} parent=5 // pred_check
        _
      $region58: #{tpu_custom_call.1} parent=5 // pred_check_branch
        %329 = sbr.rel (%p326) target = $region60
      $region59: #{tpu_custom_call.1} parent=5 // pred_region
        %s330 = ssub.s32 %s20, 1
        %p331 = pneg %p41
        %p332 = pneg %p38
        %p333 = scmp.lt.s32.totalorder %s25, 1
        %s334 = scalar_select %p333, %s25, 1
        %s335 = smul.addr %s334, 4
        %s336 = scalar_lea.vmem %s1, %s335
        %p337 = pneg %p67
        %p338 = pneg %p64
        %p339 = scmp.lt.s32.totalorder %s25, 1
        %s340 = scalar_select %p339, %s25, 1
        %s341 = smul.addr %s340, 4
        %s342 = smul.addr %s341, 8
        %s343 = scalar_lea.vmem %s2, %s342
        %p344 = pneg %p93
        %p345 = pneg %p90
        %p346 = pneg %p114
        %p347 = pneg %p111
        %p348 = pneg %p135
        %p349 = pneg %p132
        %p350 = pneg %p156
        %p351 = pneg %p153
        %p352 = pneg %p177
        %p353 = pneg %p174
        %p354 = pneg %p198
        %p355 = pneg %p195
        %p356 = pneg %p219
        %p357 = pneg %p216
        %p358 = pneg %p240
        %p359 = pneg %p237
        %p360 = pneg %p266
        %p361 = pneg %p263
        %s362 = sand.u32 %s253, 1
        %s363 = scalar_lea.sflag [#allocation6], %s362
        %s364 = sand.u32 %s253, 1
        %s365 = smul.addr %s364, 8
        %s366 = scalar_lea.vmem [#allocation5], %s365
        %p367 = scmp.lt.s32.totalorder %s25, 1
        %s368 = scalar_select %p367, %s25, 1
        %s369 = smul.addr %s368, 4
        %s370 = scalar_lea.vmem %s1, %s369
        %p371 = scmp.lt.s32.totalorder %s25, 1
        %s372 = scalar_select %p371, %s25, 1
        %s373 = smul.addr %s372, 4
        %s374 = smul.addr %s373, 8
        %s375 = scalar_lea.vmem %s2, %s374
        %v376 = vld [vmem:[%s370] sm:$0xf]
        %s377 = sld [smem:[#allocation4]]
        %v378 = vld [vmem:[%s5] sm:$0xff]
        %v379 = vld [vmem:[%s5 + $0x8] sm:$0xff]
        %v380 = vld [vmem:[%s5 + $0x10] sm:$0xff]
        %v381 = vld [vmem:[%s5 + $0x18] sm:$0xff]
        %v382 = vld [vmem:[%s5 + $0x20] sm:$0xff]
        %v383 = vld [vmem:[%s5 + $0x28] sm:$0xff]
        %v384 = vld [vmem:[%s6] sm:$0xff]
        %v385 = vld [vmem:[%s6 + $0x8] sm:$0xff]
        %v386 = vld [vmem:[%s6 + $0x10] sm:$0xff]
        %v387 = vld [vmem:[%s6 + $0x18] sm:$0xff]
        %v388 = vld [vmem:[%s6 + $0x20] sm:$0xff]
        %v389 = vld [vmem:[%s6 + $0x28] sm:$0xff]
        %391 = vset.pattern.permute.xlu0 0
        %392 = vperm.xlu0 %391, %v384
        %v393 = vpop.permute.xlu0 %392
        %396 = vset.pattern.permute.xlu0 0
        %397 = vperm.xlu0 %396, %v385
        %v398 = vpop.permute.xlu0 %397
        %401 = vset.pattern.permute.xlu0 0
        %402 = vperm.xlu0 %401, %v386
        %v403 = vpop.permute.xlu0 %402
        %406 = vset.pattern.permute.xlu0 0
        %407 = vperm.xlu0 %406, %v387
        %v408 = vpop.permute.xlu0 %407
        %411 = vset.pattern.permute.xlu0 0
        %412 = vperm.xlu0 %411, %v388
        %v413 = vpop.permute.xlu0 %412
        %416 = vset.pattern.permute.xlu0 0
        %417 = vperm.xlu0 %416, %v389
        %v418 = vpop.permute.xlu0 %417
        %vm420 = vcmask 31744
        %v422 = vsel %vm420, %v378, 0
        %v425 = vsel %vm420, %v379, 0
        %v428 = vsel %vm420, %v380, 0
        %v431 = vsel %vm420, %v381, 0
        %v434 = vsel %vm420, %v382, 0
        %v437 = vsel %vm420, %v383, 0
        %vm439 = vcmask 1043456
        %v441 = vsel %vm439, %v376, 0
        %443 = vmatprep.subr.mxu0 0.0
        %444 = vmatpush1.msra.mxu0 %v441
        %445 = vmatprep.subr.mxu0 0.0
        %446 = vmatpush1.msra.mxu0 0.0
        %447 = vmatprep.subr.mxu0 0.0
        %448 = vmatpush1.msra.mxu0 0.0
        %449 = vmatprep.subr.mxu0 0.0
        %450 = vmatpush1.msra.mxu0 0.0
        %451 = vmatprep.subr.mxu0 0.0
        %452 = vmatpush1.msra.mxu0 0.0
        %453 = vmatprep.subr.mxu0 0.0
        %454 = vmatpush1.msra.mxu0 0.0
        %455 = vmatprep.subr.mxu0 0.0
        %456 = vmatpush1.msra.mxu0 0.0
        %457 = vmatprep.subr.mxu0 0.0
        %458 = vmatpush1.msra.mxu0 0.0
        %459 = vmatprep.subr.mxu0 0.0
        %460 = vmatpush1.msra.mxu0 0.0
        %461 = vmatprep.subr.mxu0 0.0
        %462 = vmatpush1.msra.mxu0 0.0
        %463 = vmatprep.subr.mxu0 0.0
        %464 = vmatpush1.msra.mxu0 0.0
        %465 = vmatprep.subr.mxu0 0.0
        %466 = vmatpush1.msra.mxu0 0.0
        %467 = vmatprep.subr.mxu0 0.0
        %468 = vmatpush1.msra.mxu0 0.0
        %469 = vmatprep.subr.mxu0 0.0
        %470 = vmatpush1.msra.mxu0 0.0
        %471 = vmatprep.subr.mxu0 0.0
        %472 = vmatpush1.msra.mxu0 0.0
        %473 = vmatprep.subr.mxu0 0.0
        %474 = vmatpush1.msra.mxu0 0.0
        %475 = vmatprep.subr.mxu0 0.0
        %476 = vmatpush1.msra.mxu0 0.0
        %477 = vmatprep.subr.mxu0 0.0
        %478 = vmatpush1.msra.mxu0 0.0
        %479 = vmatprep.subr.mxu0 0.0
        %480 = vmatpush1.msra.mxu0 0.0
        %481 = vmatprep.subr.mxu0 0.0
        %482 = vmatpush1.msra.mxu0 0.0
        %483 = vmatprep.subr.mxu0 0.0
        %484 = vmatpush1.msra.mxu0 0.0
        %485 = vmatprep.subr.mxu0 0.0
        %486 = vmatpush1.msra.mxu0 0.0
        %487 = vmatprep.subr.mxu0 0.0
        %488 = vmatpush1.msra.mxu0 0.0
        %489 = vmatprep.subr.mxu0 0.0
        %490 = vmatpush1.msra.mxu0 0.0
        %491 = vmatprep.subr.mxu0 0.0
        %492 = vmatpush1.msra.mxu0 0.0
        %493 = vmatprep.subr.mxu0 0.0
        %494 = vmatpush1.msra.mxu0 0.0
        %495 = vmatprep.subr.mxu0 0.0
        %496 = vmatpush1.msra.mxu0 0.0
        %497 = vmatprep.subr.mxu0 0.0
        %498 = vmatpush1.msra.mxu0 0.0
        %499 = vmatprep.subr.mxu0 0.0
        %500 = vmatpush1.msra.mxu0 0.0
        %501 = vmatprep.subr.mxu0 0.0
        %502 = vmatpush1.msra.mxu0 0.0
        %503 = vmatprep.subr.mxu0 0.0
        %504 = vmatpush1.msra.mxu0 0.0
        %505 = vmatprep.subr.mxu0 0.0
        %506 = vmatpush1.msra.mxu0 0.0
        %507 = vmatprep.mubr.f32.mxu0 0.0
        %508 = vmatmul.mubr.f32.gmra.mrb[0].mxu0 %v422
        %v509 = vpop.f32.mrb[0].mxu0
        %v510 = vadd.f32 %v393, %v509
        %v511 = vpop.f32.mrb[0].mxu0
        %512 = vmatprep.mubr.f32.mxu0 0.0
        %513 = vmatmul.mubr.f32.gmra.mrb[0].mxu0 %v425
        %v514 = vpop.f32.mrb[0].mxu0
        %v515 = vadd.f32 %v398, %v514
        %v516 = vpop.f32.mrb[0].mxu0
        %517 = vmatprep.mubr.f32.mxu0 0.0
        %518 = vmatmul.mubr.f32.gmra.mrb[0].mxu0 %v428
        %v519 = vpop.f32.mrb[0].mxu0
        %v520 = vadd.f32 %v403, %v519
        %v521 = vpop.f32.mrb[0].mxu0
        %522 = vmatprep.mubr.f32.mxu0 0.0
        %523 = vmatmul.mubr.f32.gmra.mrb[0].mxu0 %v431
        %v524 = vpop.f32.mrb[0].mxu0
        %v525 = vadd.f32 %v408, %v524
        %v526 = vpop.f32.mrb[0].mxu0
        %527 = vmatprep.mubr.f32.mxu0 0.0
        %528 = vmatmul.mubr.f32.gmra.mrb[0].mxu0 %v434
        %v529 = vpop.f32.mrb[0].mxu0
        %v530 = vadd.f32 %v413, %v529
        %v531 = vpop.f32.mrb[0].mxu0
        %532 = vmatprep.mubr.f32.mxu0 0.0
        %533 = vmatmul.mubr.f32.gmra.mrb[0].mxu0 %v437
        %v534 = vpop.f32.mrb[0].mxu0
        %v535 = vadd.f32 %v418, %v534
        %v536 = vpop.f32.mrb[0].mxu0
        %537 = vdwg.mxu0
        %v538 = vld [vmem:[%s7] sm:$0xff]
        %v539 = vld [vmem:[%s7 + $0x8] sm:$0xff]
        %v540 = vld [vmem:[%s7 + $0x10] sm:$0xff]
        %v541 = vld [vmem:[%s7 + $0x18] sm:$0xff]
        %v542 = vld [vmem:[%s7 + $0x20] sm:$0xff]
        %v543 = vld [vmem:[%s7 + $0x28] sm:$0xff]
        %v544 = vld [vmem:[%s7 + $0x30] sm:$0xff]
        %v545 = vld [vmem:[%s7 + $0x38] sm:$0xff]
        %v546 = vld [vmem:[%s7 + $0x40] sm:$0xff]
        %v547 = vld [vmem:[%s7 + $0x48] sm:$0xff]
        %v548 = vld [vmem:[%s7 + $0x50] sm:$0xff]
        %v549 = vld [vmem:[%s7 + $0x58] sm:$0xff]
        %v550 = vld [vmem:[%s7 + $0x60] sm:$0xff]
        %v551 = vld [vmem:[%s7 + $0x68] sm:$0xff]
        %v552 = vld [vmem:[%s7 + $0x70] sm:$0xff]
        %v553 = vld [vmem:[%s7 + $0x78] sm:$0xff]
        %v554 = vld [vmem:[%s7 + $0x80] sm:$0xff]
        %v555 = vld [vmem:[%s7 + $0x88] sm:$0xff]
        %v556 = vld [vmem:[%s7 + $0x90] sm:$0xff]
        %v557 = vld [vmem:[%s7 + $0x98] sm:$0xff]
        %v558 = vld [vmem:[%s7 + $0xa0] sm:$0xff]
        %v559 = vld [vmem:[%s7 + $0xa8] sm:$0xff]
        %v560 = vld [vmem:[%s7 + $0xb0] sm:$0xff]
        %v561 = vld [vmem:[%s7 + $0xb8] sm:$0xff]
        %v562 = vld [vmem:[%s375] sm:$0xff]
        %v563 = vld [vmem:[%s375 + $0x8] sm:$0xff]
        %v564 = vld [vmem:[%s375 + $0x10] sm:$0xff]
        %v565 = vld [vmem:[%s375 + $0x18] sm:$0xff]
        %v566 = vld [vmem:[%s8] sm:$0xff]
        %v567 = vld [vmem:[%s8 + $0x8] sm:$0xff]
        %v568 = vld [vmem:[%s8 + $0x10] sm:$0xff]
        %v569 = vld [vmem:[%s8 + $0x18] sm:$0xff]
        %v570 = vld [vmem:[%s8 + $0x20] sm:$0xff]
        %v571 = vld [vmem:[%s8 + $0x28] sm:$0xff]
        %v572 = vld [vmem:[%s8 + $0x30] sm:$0xff]
        %v573 = vld [vmem:[%s8 + $0x38] sm:$0xff]
        %v574 = vld [vmem:[%s8 + $0x40] sm:$0xff]
        %v575 = vld [vmem:[%s8 + $0x48] sm:$0xff]
        %v576 = vld [vmem:[%s8 + $0x50] sm:$0xff]
        %v577 = vld [vmem:[%s8 + $0x58] sm:$0xff]
        %v578 = vld [vmem:[%s8 + $0x60] sm:$0xff]
        %v579 = vld [vmem:[%s8 + $0x68] sm:$0xff]
        %v580 = vld [vmem:[%s8 + $0x70] sm:$0xff]
        %v581 = vld [vmem:[%s8 + $0x78] sm:$0xff]
        %v582 = vld [vmem:[%s8 + $0x80] sm:$0xff]
        %v583 = vld [vmem:[%s8 + $0x88] sm:$0xff]
        %v584 = vld [vmem:[%s8 + $0x90] sm:$0xff]
        %v585 = vld [vmem:[%s8 + $0x98] sm:$0xff]
        %v586 = vld [vmem:[%s8 + $0xa0] sm:$0xff]
        %v587 = vld [vmem:[%s8 + $0xa8] sm:$0xff]
        %v588 = vld [vmem:[%s8 + $0xb0] sm:$0xff]
        %v589 = vld [vmem:[%s8 + $0xb8] sm:$0xff]
        %591 = vset.pattern.permute.xlu0 0
        %592 = vperm.xlu0 %591, %v566
        %v593 = vpop.permute.xlu0 %592
        %596 = vset.pattern.permute.xlu0 0
        %597 = vperm.xlu0 %596, %v567
        %v598 = vpop.permute.xlu0 %597
        %601 = vset.pattern.permute.xlu0 0
        %602 = vperm.xlu0 %601, %v568
        %v603 = vpop.permute.xlu0 %602
        %606 = vset.pattern.permute.xlu0 0
        %607 = vperm.xlu0 %606, %v569
        %v608 = vpop.permute.xlu0 %607
        %611 = vset.pattern.permute.xlu0 0
        %612 = vperm.xlu0 %611, %v570
        %v613 = vpop.permute.xlu0 %612
        %616 = vset.pattern.permute.xlu0 0
        %617 = vperm.xlu0 %616, %v571
        %v618 = vpop.permute.xlu0 %617
        %621 = vset.pattern.permute.xlu0 0
        %622 = vperm.xlu0 %621, %v572
        %v623 = vpop.permute.xlu0 %622
        %626 = vset.pattern.permute.xlu0 0
        %627 = vperm.xlu0 %626, %v573
        %v628 = vpop.permute.xlu0 %627
        %631 = vset.pattern.permute.xlu0 0
        %632 = vperm.xlu0 %631, %v574
        %v633 = vpop.permute.xlu0 %632
        %636 = vset.pattern.permute.xlu0 0
        %637 = vperm.xlu0 %636, %v575
        %v638 = vpop.permute.xlu0 %637
        %641 = vset.pattern.permute.xlu0 0
        %642 = vperm.xlu0 %641, %v576
        %v643 = vpop.permute.xlu0 %642
        %646 = vset.pattern.permute.xlu0 0
        %647 = vperm.xlu0 %646, %v577
        %v648 = vpop.permute.xlu0 %647
        %651 = vset.pattern.permute.xlu0 0
        %652 = vperm.xlu0 %651, %v578
        %v653 = vpop.permute.xlu0 %652
        %656 = vset.pattern.permute.xlu0 0
        %657 = vperm.xlu0 %656, %v579
        %v658 = vpop.permute.xlu0 %657
        %661 = vset.pattern.permute.xlu0 0
        %662 = vperm.xlu0 %661, %v580
        %v663 = vpop.permute.xlu0 %662
        %666 = vset.pattern.permute.xlu0 0
        %667 = vperm.xlu0 %666, %v581
        %v668 = vpop.permute.xlu0 %667
        %671 = vset.pattern.permute.xlu0 0
        %672 = vperm.xlu0 %671, %v582
        %v673 = vpop.permute.xlu0 %672
        %676 = vset.pattern.permute.xlu0 0
        %677 = vperm.xlu0 %676, %v583
        %v678 = vpop.permute.xlu0 %677
        %681 = vset.pattern.permute.xlu0 0
        %682 = vperm.xlu0 %681, %v584
        %v683 = vpop.permute.xlu0 %682
        %686 = vset.pattern.permute.xlu0 0
        %687 = vperm.xlu0 %686, %v585
        %v688 = vpop.permute.xlu0 %687
        %691 = vset.pattern.permute.xlu0 0
        %692 = vperm.xlu0 %691, %v586
        %v693 = vpop.permute.xlu0 %692
        %696 = vset.pattern.permute.xlu0 0
        %697 = vperm.xlu0 %696, %v587
        %v698 = vpop.permute.xlu0 %697
        %701 = vset.pattern.permute.xlu0 0
        %702 = vperm.xlu0 %701, %v588
        %v703 = vpop.permute.xlu0 %702
        %706 = vset.pattern.permute.xlu0 0
        %707 = vperm.xlu0 %706, %v589
        %v708 = vpop.permute.xlu0 %707
        %vm710 = vcmask 261120
        %v712 = vsel %vm710, %v538, 0
        %v715 = vsel %vm710, %v539, 0
        %v718 = vsel %vm710, %v540, 0
        %v721 = vsel %vm710, %v541, 0
        %v724 = vsel %vm710, %v542, 0
        %v727 = vsel %vm710, %v543, 0
        %v730 = vsel %vm710, %v544, 0
        %v733 = vsel %vm710, %v545, 0
        %v736 = vsel %vm710, %v546, 0
        %v739 = vsel %vm710, %v547, 0
        %v742 = vsel %vm710, %v548, 0
        %v745 = vsel %vm710, %v549, 0
        %v748 = vsel %vm710, %v550, 0
        %v751 = vsel %vm710, %v551, 0
        %v754 = vsel %vm710, %v552, 0
        %v757 = vsel %vm710, %v553, 0
        %v760 = vsel %vm710, %v554, 0
        %v763 = vsel %vm710, %v555, 0
        %v766 = vsel %vm710, %v556, 0
        %v769 = vsel %vm710, %v557, 0
        %v772 = vsel %vm710, %v558, 0
        %v775 = vsel %vm710, %v559, 0
        %v778 = vsel %vm710, %v560, 0
        %v781 = vsel %vm710, %v561, 0
        %783 = vmatprep.subr.mxu0 0.0
        %784 = vmatpush1.msra.mxu0 %v562
        %785 = vmatprep.subr.mxu0 0.0
        %786 = vmatpush1.msra.mxu0 %v563
        %787 = vmatprep.subr.mxu0 0.0
        %788 = vmatpush1.msra.mxu0 %v564
        %789 = vmatprep.subr.mxu0 0.0
        %790 = vmatpush1.msra.mxu0 %v565
        %791 = vmatprep.subr.mxu0 0.0
        %792 = vmatpush1.msra.mxu0 0.0
        %793 = vmatprep.subr.mxu0 0.0
        %794 = vmatpush1.msra.mxu0 0.0
        %795 = vmatprep.subr.mxu0 0.0
        %796 = vmatpush1.msra.mxu0 0.0
        %797 = vmatprep.subr.mxu0 0.0
        %798 = vmatpush1.msra.mxu0 0.0
        %799 = vmatprep.subr.mxu0 0.0
        %800 = vmatpush1.msra.mxu0 0.0
        %801 = vmatprep.subr.mxu0 0.0
        %802 = vmatpush1.msra.mxu0 0.0
        %803 = vmatprep.subr.mxu0 0.0
        %804 = vmatpush1.msra.mxu0 0.0
        %805 = vmatprep.subr.mxu0 0.0
        %806 = vmatpush1.msra.mxu0 0.0
        %807 = vmatprep.subr.mxu0 0.0
        %808 = vmatpush1.msra.mxu0 0.0
        %809 = vmatprep.subr.mxu0 0.0
        %810 = vmatpush1.msra.mxu0 0.0
        %811 = vmatprep.subr.mxu0 0.0
        %812 = vmatpush1.msra.mxu0 0.0
        %813 = vmatprep.subr.mxu0 0.0
        %814 = vmatpush1.msra.mxu0 0.0
        %815 = vmatprep.subr.mxu0 0.0
        %816 = vmatpush1.msra.mxu0 0.0
        %817 = vmatprep.subr.mxu0 0.0
        %818 = vmatpush1.msra.mxu0 0.0
        %819 = vmatprep.subr.mxu0 0.0
        %820 = vmatpush1.msra.mxu0 0.0
        %821 = vmatprep.subr.mxu0 0.0
        %822 = vmatpush1.msra.mxu0 0.0
        %823 = vmatprep.subr.mxu0 0.0
        %824 = vmatpush1.msra.mxu0 0.0
        %825 = vmatprep.subr.mxu0 0.0
        %826 = vmatpush1.msra.mxu0 0.0
        %827 = vmatprep.subr.mxu0 0.0
        %828 = vmatpush1.msra.mxu0 0.0
        %829 = vmatprep.subr.mxu0 0.0
        %830 = vmatpush1.msra.mxu0 0.0
        %831 = vmatprep.subr.mxu0 0.0
        %832 = vmatpush1.msra.mxu0 0.0
        %833 = vmatprep.subr.mxu0 0.0
        %834 = vmatpush1.msra.mxu0 0.0
        %835 = vmatprep.subr.mxu0 0.0
        %836 = vmatpush1.msra.mxu0 0.0
        %837 = vmatprep.subr.mxu0 0.0
        %838 = vmatpush1.msra.mxu0 0.0
        %839 = vmatprep.subr.mxu0 0.0
        %840 = vmatpush1.msra.mxu0 0.0
        %841 = vmatprep.subr.mxu0 0.0
        %842 = vmatpush1.msra.mxu0 0.0
        %843 = vmatprep.subr.mxu0 0.0
        %844 = vmatpush1.msra.mxu0 0.0
        %845 = vmatprep.subr.mxu0 0.0
        %846 = vmatpush1.msra.mxu0 0.0
        %847 = vmatprep.mubr.f32.mxu0 0.0
        %848 = vmatmul.mubr.f32.gmra.mrb[0].mxu0 %v712
        %v849 = vpop.f32.mrb[0].mxu0
        %v850 = vadd.f32 %v593, %v849
        %v851 = vpop.f32.mrb[0].mxu0
        %852 = vmatprep.mubr.f32.mxu0 0.0
        %853 = vmatmul.mubr.f32.gmra.mrb[0].mxu0 %v715
        %v854 = vpop.f32.mrb[0].mxu0
        %v855 = vadd.f32 %v598, %v854
        %v856 = vpop.f32.mrb[0].mxu0
        %857 = vmatprep.mubr.f32.mxu0 0.0
        %858 = vmatmul.mubr.f32.gmra.mrb[0].mxu0 %v718
        %v859 = vpop.f32.mrb[0].mxu0
        %v860 = vadd.f32 %v603, %v859
        %v861 = vpop.f32.mrb[0].mxu0
        %862 = vmatprep.mubr.f32.mxu0 0.0
        %863 = vmatmul.mubr.f32.gmra.mrb[0].mxu0 %v721
        %v864 = vpop.f32.mrb[0].mxu0
        %v865 = vadd.f32 %v608, %v864
        %v866 = vpop.f32.mrb[0].mxu0
        %867 = vmatprep.mubr.f32.mxu0 0.0
        %868 = vmatmul.mubr.f32.gmra.mrb[0].mxu0 %v724
        %v869 = vpop.f32.mrb[0].mxu0
        %v870 = vadd.f32 %v613, %v869
        %v871 = vpop.f32.mrb[0].mxu0
        %872 = vmatprep.mubr.f32.mxu0 0.0
        %873 = vmatmul.mubr.f32.gmra.mrb[0].mxu0 %v727
        %v874 = vpop.f32.mrb[0].mxu0
        %v875 = vadd.f32 %v618, %v874
        %v876 = vpop.f32.mrb[0].mxu0
        %877 = vmatprep.mubr.f32.mxu0 0.0
        %878 = vmatmul.mubr.f32.gmra.mrb[0].mxu0 %v730
        %v879 = vpop.f32.mrb[0].mxu0
        %v880 = vadd.f32 %v623, %v879
        %v881 = vpop.f32.mrb[0].mxu0
        %882 = vmatprep.mubr.f32.mxu0 0.0
        %883 = vmatmul.mubr.f32.gmra.mrb[0].mxu0 %v733
        %v884 = vpop.f32.mrb[0].mxu0
        %v885 = vadd.f32 %v628, %v884
        %v886 = vpop.f32.mrb[0].mxu0
        %887 = vmatprep.mubr.f32.mxu0 0.0
        %888 = vmatmul.mubr.f32.gmra.mrb[0].mxu0 %v736
        %v889 = vpop.f32.mrb[0].mxu0
        %v890 = vadd.f32 %v633, %v889
        %v891 = vpop.f32.mrb[0].mxu0
        %892 = vmatprep.mubr.f32.mxu0 0.0
        %893 = vmatmul.mubr.f32.gmra.mrb[0].mxu0 %v739
        %v894 = vpop.f32.mrb[0].mxu0
        %v895 = vadd.f32 %v638, %v894
        %v896 = vpop.f32.mrb[0].mxu0
        %897 = vmatprep.mubr.f32.mxu0 0.0
        %898 = vmatmul.mubr.f32.gmra.mrb[0].mxu0 %v742
        %v899 = vpop.f32.mrb[0].mxu0
        %v900 = vadd.f32 %v643, %v899
        %v901 = vpop.f32.mrb[0].mxu0
        %902 = vmatprep.mubr.f32.mxu0 0.0
        %903 = vmatmul.mubr.f32.gmra.mrb[0].mxu0 %v745
        %v904 = vpop.f32.mrb[0].mxu0
        %v905 = vadd.f32 %v648, %v904
        %v906 = vpop.f32.mrb[0].mxu0
        %907 = vmatprep.mubr.f32.mxu0 0.0
        %908 = vmatmul.mubr.f32.gmra.mrb[0].mxu0 %v748
        %v909 = vpop.f32.mrb[0].mxu0
        %v910 = vadd.f32 %v653, %v909
        %v911 = vpop.f32.mrb[0].mxu0
        %912 = vmatprep.mubr.f32.mxu0 0.0
        %913 = vmatmul.mubr.f32.gmra.mrb[0].mxu0 %v751
        %v914 = vpop.f32.mrb[0].mxu0
        %v915 = vadd.f32 %v658, %v914
        %v916 = vpop.f32.mrb[0].mxu0
        %917 = vmatprep.mubr.f32.mxu0 0.0
        %918 = vmatmul.mubr.f32.gmra.mrb[0].mxu0 %v754
        %v919 = vpop.f32.mrb[0].mxu0
        %v920 = vadd.f32 %v663, %v919
        %v921 = vpop.f32.mrb[0].mxu0
        %922 = vmatprep.mubr.f32.mxu0 0.0
        %923 = vmatmul.mubr.f32.gmra.mrb[0].mxu0 %v757
        %v924 = vpop.f32.mrb[0].mxu0
        %v925 = vadd.f32 %v668, %v924
        %v926 = vpop.f32.mrb[0].mxu0
        %927 = vmatprep.mubr.f32.mxu0 0.0
        %928 = vmatmul.mubr.f32.gmra.mrb[0].mxu0 %v760
        %v929 = vpop.f32.mrb[0].mxu0
        %v930 = vadd.f32 %v673, %v929
        %v931 = vpop.f32.mrb[0].mxu0
        %932 = vmatprep.mubr.f32.mxu0 0.0
        %933 = vmatmul.mubr.f32.gmra.mrb[0].mxu0 %v763
        %v934 = vpop.f32.mrb[0].mxu0
        %v935 = vadd.f32 %v678, %v934
        %v936 = vpop.f32.mrb[0].mxu0
        %937 = vmatprep.mubr.f32.mxu0 0.0
        %938 = vmatmul.mubr.f32.gmra.mrb[0].mxu0 %v766
        %v939 = vpop.f32.mrb[0].mxu0
        %v940 = vadd.f32 %v683, %v939
        %v941 = vpop.f32.mrb[0].mxu0
        %942 = vmatprep.mubr.f32.mxu0 0.0
        %943 = vmatmul.mubr.f32.gmra.mrb[0].mxu0 %v769
        %v944 = vpop.f32.mrb[0].mxu0
        %v945 = vadd.f32 %v688, %v944
        %v946 = vpop.f32.mrb[0].mxu0
        %947 = vmatprep.mubr.f32.mxu0 0.0
        %948 = vmatmul.mubr.f32.gmra.mrb[0].mxu0 %v772
        %v949 = vpop.f32.mrb[0].mxu0
        %v950 = vadd.f32 %v693, %v949
        %v951 = vpop.f32.mrb[0].mxu0
        %952 = vmatprep.mubr.f32.mxu0 0.0
        %953 = vmatmul.mubr.f32.gmra.mrb[0].mxu0 %v775
        %v954 = vpop.f32.mrb[0].mxu0
        %v955 = vadd.f32 %v698, %v954
        %v956 = vpop.f32.mrb[0].mxu0
        %957 = vmatprep.mubr.f32.mxu0 0.0
        %958 = vmatmul.mubr.f32.gmra.mrb[0].mxu0 %v778
        %v959 = vpop.f32.mrb[0].mxu0
        %v960 = vadd.f32 %v703, %v959
        %v961 = vpop.f32.mrb[0].mxu0
        %962 = vmatprep.mubr.f32.mxu0 0.0
        %963 = vmatmul.mubr.f32.gmra.mrb[0].mxu0 %v781
        %v964 = vpop.f32.mrb[0].mxu0
        %v965 = vadd.f32 %v708, %v964
        %v966 = vpop.f32.mrb[0].mxu0
        %967 = vdwg.mxu0
        %vm968 = vcmask 130048
        %969 = vst.msk [vmem:[#allocation2] sm:$0xff] %vm968, %v850
        %970 = vst.msk [vmem:[#allocation2 + $0x8] sm:$0xff] %vm968, %v855
        %971 = vst.msk [vmem:[#allocation2 + $0x10] sm:$0xff] %vm968, %v860
        %972 = vst.msk [vmem:[#allocation2 + $0x18] sm:$0xff] %vm968, %v865
        %973 = vst.msk [vmem:[#allocation2 + $0x20] sm:$0xff] %vm968, %v870
        %974 = vst.msk [vmem:[#allocation2 + $0x28] sm:$0xff] %vm968, %v875
        %975 = vst.msk [vmem:[#allocation2 + $0x30] sm:$0xff] %vm968, %v880
        %976 = vst.msk [vmem:[#allocation2 + $0x38] sm:$0xff] %vm968, %v885
        %977 = vst.msk [vmem:[#allocation2 + $0x40] sm:$0xff] %vm968, %v890
        %978 = vst.msk [vmem:[#allocation2 + $0x48] sm:$0xff] %vm968, %v895
        %979 = vst.msk [vmem:[#allocation2 + $0x50] sm:$0xff] %vm968, %v900
        %980 = vst.msk [vmem:[#allocation2 + $0x58] sm:$0xff] %vm968, %v905
        %981 = vst.msk [vmem:[#allocation2 + $0x60] sm:$0xff] %vm968, %v910
        %982 = vst.msk [vmem:[#allocation2 + $0x68] sm:$0xff] %vm968, %v915
        %983 = vst.msk [vmem:[#allocation2 + $0x70] sm:$0xff] %vm968, %v920
        %984 = vst.msk [vmem:[#allocation2 + $0x78] sm:$0xff] %vm968, %v925
        %985 = vst.msk [vmem:[#allocation2 + $0x80] sm:$0xff] %vm968, %v930
        %986 = vst.msk [vmem:[#allocation2 + $0x88] sm:$0xff] %vm968, %v935
        %987 = vst.msk [vmem:[#allocation2 + $0x90] sm:$0xff] %vm968, %v940
        %988 = vst.msk [vmem:[#allocation2 + $0x98] sm:$0xff] %vm968, %v945
        %989 = vst.msk [vmem:[#allocation2 + $0xa0] sm:$0xff] %vm968, %v950
        %990 = vst.msk [vmem:[#allocation2 + $0xa8] sm:$0xff] %vm968, %v955
        %991 = vst.msk [vmem:[#allocation2 + $0xb0] sm:$0xff] %vm968, %v960
        %992 = vst.msk [vmem:[#allocation2 + $0xb8] sm:$0xff] %vm968, %v965
        %v993 = vld [vmem:[#allocation2] sm:$0xff]
        %994 = vst.msk [vmem:[#allocation3] sm:$0xff] %vm968, %v993
        %v995 = vld [vmem:[#allocation2 + $0x8] sm:$0xff]
        %997 = vrot.lane.b32.xlu0 %v995, 16
        %v998 = vpop.permute.xlu0 %997
        %vm1000 = vcmask 261248
        %1001 = vst.msk [vmem:[#allocation3] sm:$0xff] %vm1000, %v998
        %v1002 = vld [vmem:[#allocation2 + $0x10] sm:$0xff]
        %1004 = vrot.lane.b32.xlu0 %v1002, 32
        %v1005 = vpop.permute.xlu0 %1004
        %vm1007 = vcmask 392448
        %1008 = vst.msk [vmem:[#allocation3] sm:$0xff] %vm1007, %v1005
        %v1009 = vld [vmem:[#allocation2 + $0x18] sm:$0xff]
        %1011 = vrot.lane.b32.xlu0 %v1009, 48
        %v1012 = vpop.permute.xlu0 %1011
        %vm1014 = vcmask 523648
        %1015 = vst.msk [vmem:[#allocation3] sm:$0xff] %vm1014, %v1012
        %v1016 = vld [vmem:[#allocation2 + $0x20] sm:$0xff]
        %1018 = vrot.lane.b32.xlu0 %v1016, 64
        %v1019 = vpop.permute.xlu0 %1018
        %vm1021 = vcmask 654848
        %1022 = vst.msk [vmem:[#allocation3] sm:$0xff] %vm1021, %v1019
        %v1023 = vld [vmem:[#allocation2 + $0x28] sm:$0xff]
        %1025 = vrot.lane.b32.xlu0 %v1023, 80
        %v1026 = vpop.permute.xlu0 %1025
        %vm1028 = vcmask 786048
        %1029 = vst.msk [vmem:[#allocation3] sm:$0xff] %vm1028, %v1026
        %v1030 = vld [vmem:[#allocation2 + $0x30] sm:$0xff]
        %1032 = vrot.lane.b32.xlu0 %v1030, 96
        %v1033 = vpop.permute.xlu0 %1032
        %vm1035 = vcmask 917248
        %1036 = vst.msk [vmem:[#allocation3] sm:$0xff] %vm1035, %v1033
        %v1037 = vld [vmem:[#allocation2 + $0x38] sm:$0xff]
        %1039 = vrot.lane.b32.xlu0 %v1037, 112
        %v1040 = vpop.permute.xlu0 %1039
        %vm1042 = vcmask 1048448
        %1043 = vst.msk [vmem:[#allocation3] sm:$0xff] %vm1042, %v1040
        %v1044 = vld [vmem:[#allocation3] sm:$0xff]
        %1045 = vxpose.xlu0.b32.start [1/16] %v510, 128
        %1046 = vxpose.xlu0.b32.cont [2/16] 0.0, 128
        %1047 = vxpose.xlu0.b32.cont [3/16] 0.0, 128
        %1048 = vxpose.xlu0.b32.cont [4/16] 0.0, 128
        %1049 = vxpose.xlu0.b32.cont [5/16] 0.0, 128
        %1050 = vxpose.xlu0.b32.cont [6/16] 0.0, 128
        %1051 = vxpose.xlu0.b32.cont [7/16] 0.0, 128
        %1052 = vxpose.xlu0.b32.cont [8/16] 0.0, 128
        %1053 = vxpose.xlu0.b32.cont [9/16] 0.0, 128
        %1054 = vxpose.xlu0.b32.cont [10/16] 0.0, 128
        %1055 = vxpose.xlu0.b32.cont [11/16] 0.0, 128
        %1056 = vxpose.xlu0.b32.cont [12/16] 0.0, 128
        %1057 = vxpose.xlu0.b32.cont [13/16] 0.0, 128
        %1058 = vxpose.xlu0.b32.cont [14/16] 0.0, 128
        %1059 = vxpose.xlu0.b32.cont [15/16] 0.0, 128
        %1060 = vxpose.xlu0.b32.end [16/16] 0.0, 128
        %v1061 = vpop.trf.xlu0
        %v1062 = vpop.trf.xlu0
        %v1063 = vpop.trf.xlu0
        %v1064 = vpop.trf.xlu0
        %v1065 = vpop.trf.xlu0
        %v1066 = vpop.trf.xlu0
        %v1067 = vpop.trf.xlu0
        %v1068 = vpop.trf.xlu0
        %v1069 = vpop.trf.xlu0
        %v1070 = vpop.trf.xlu0
        %v1071 = vpop.trf.xlu0
        %v1072 = vpop.trf.xlu0
        %v1073 = vpop.trf.xlu0
        %v1074 = vpop.trf.xlu0
        %v1075 = vpop.trf.xlu0
        %v1076 = vpop.trf.xlu0
        %vm1077 = vcmask 64512
        %v1079 = vsel %vm1077, %v1061, 0
        %v1082 = vsel %vm1077, %v1062, 0
        %v1085 = vsel %vm1077, %v1063, 0
        %v1088 = vsel %vm1077, %v1064, 0
        %v1091 = vsel %vm1077, %v1065, 0
        %v1094 = vsel %vm1077, %v1066, 0
        %v1097 = vsel %vm1077, %v1067, 0
        %v1100 = vsel %vm1077, %v1068, 0
        %v1103 = vsel %vm1077, %v1069, 0
        %v1106 = vsel %vm1077, %v1070, 0
        %v1109 = vsel %vm1077, %v1071, 0
        %v1112 = vsel %vm1077, %v1072, 0
        %v1115 = vsel %vm1077, %v1073, 0
        %v1118 = vsel %vm1077, %v1074, 0
        %v1121 = vsel %vm1077, %v1075, 0
        %v1124 = vsel %vm1077, %v1076, 0
        %1126 = vmatprep.subr.mxu0 0.0
        %1127 = vmatpush1.msra.mxu0 %v1044
        %1128 = vmatprep.subr.mxu0 0.0
        %1129 = vmatpush1.msra.mxu0 0.0
        %1130 = vmatprep.subr.mxu0 0.0
        %1131 = vmatpush1.msra.mxu0 0.0
        %1132 = vmatprep.subr.mxu0 0.0
        %1133 = vmatpush1.msra.mxu0 0.0
        %1134 = vmatprep.subr.mxu0 0.0
        %1135 = vmatpush1.msra.mxu0 0.0
        %1136 = vmatprep.subr.mxu0 0.0
        %1137 = vmatpush1.msra.mxu0 0.0
        %1138 = vmatprep.subr.mxu0 0.0
        %1139 = vmatpush1.msra.mxu0 0.0
        %1140 = vmatprep.subr.mxu0 0.0
        %1141 = vmatpush1.msra.mxu0 0.0
        %1142 = vmatprep.subr.mxu0 0.0
        %1143 = vmatpush1.msra.mxu0 0.0
        %1144 = vmatprep.subr.mxu0 0.0
        %1145 = vmatpush1.msra.mxu0 0.0
        %1146 = vmatprep.subr.mxu0 0.0
        %1147 = vmatpush1.msra.mxu0 0.0
        %1148 = vmatprep.subr.mxu0 0.0
        %1149 = vmatpush1.msra.mxu0 0.0
        %1150 = vmatprep.subr.mxu0 0.0
        %1151 = vmatpush1.msra.mxu0 0.0
        %1152 = vmatprep.subr.mxu0 0.0
        %1153 = vmatpush1.msra.mxu0 0.0
        %1154 = vmatprep.subr.mxu0 0.0
        %1155 = vmatpush1.msra.mxu0 0.0
        %1156 = vmatprep.subr.mxu0 0.0
        %1157 = vmatpush1.msra.mxu0 0.0
        %1158 = vmatprep.subr.mxu0 0.0
        %1159 = vmatpush1.msra.mxu0 0.0
        %1160 = vmatprep.subr.mxu0 0.0
        %1161 = vmatpush1.msra.mxu0 0.0
        %1162 = vmatprep.subr.mxu0 0.0
        %1163 = vmatpush1.msra.mxu0 0.0
        %1164 = vmatprep.subr.mxu0 0.0
        %1165 = vmatpush1.msra.mxu0 0.0
        %1166 = vmatprep.subr.mxu0 0.0
        %1167 = vmatpush1.msra.mxu0 0.0
        %1168 = vmatprep.subr.mxu0 0.0
        %1169 = vmatpush1.msra.mxu0 0.0
        %1170 = vmatprep.subr.mxu0 0.0
        %1171 = vmatpush1.msra.mxu0 0.0
        %1172 = vmatprep.subr.mxu0 0.0
        %1173 = vmatpush1.msra.mxu0 0.0
        %1174 = vmatprep.subr.mxu0 0.0
        %1175 = vmatpush1.msra.mxu0 0.0
        %1176 = vmatprep.subr.mxu0 0.0
        %1177 = vmatpush1.msra.mxu0 0.0
        %1178 = vmatprep.subr.mxu0 0.0
        %1179 = vmatpush1.msra.mxu0 0.0
        %1180 = vmatprep.subr.mxu0 0.0
        %1181 = vmatpush1.msra.mxu0 0.0
        %1182 = vmatprep.subr.mxu0 0.0
        %1183 = vmatpush1.msra.mxu0 0.0
        %1184 = vmatprep.subr.mxu0 0.0
        %1185 = vmatpush1.msra.mxu0 0.0
        %1186 = vmatprep.subr.mxu0 0.0
        %1187 = vmatpush1.msra.mxu0 0.0
        %1188 = vmatprep.subr.mxu0 0.0
        %1189 = vmatpush1.msra.mxu0 0.0
        %1190 = vmatprep.mubr.f32.mxu0 0.0
        %1191 = vmatmul.mubr.f32.gmra.mrb[0].mxu0 %v1079
        %v1192 = vpop.f32.mrb[0].mxu0
        %v1193 = vadd.f32 0.0, %v1192
        %v1194 = vpop.f32.mrb[0].mxu0
        %1195 = vmatprep.mubr.f32.mxu0 0.0
        %1196 = vmatmul.mubr.f32.gmra.mrb[0].mxu0 %v1082
        %v1197 = vpop.f32.mrb[0].mxu0
        %v1198 = vadd.f32 0.0, %v1197
        %v1199 = vpop.f32.mrb[0].mxu0
        %1200 = vmatprep.mubr.f32.mxu0 0.0
        %1201 = vmatmul.mubr.f32.gmra.mrb[0].mxu0 %v1085
        %v1202 = vpop.f32.mrb[0].mxu0
        %v1203 = vadd.f32 0.0, %v1202
        %v1204 = vpop.f32.mrb[0].mxu0
        %1205 = vmatprep.mubr.f32.mxu0 0.0
        %1206 = vmatmul.mubr.f32.gmra.mrb[0].mxu0 %v1088
        %v1207 = vpop.f32.mrb[0].mxu0
        %v1208 = vadd.f32 0.0, %v1207
        %v1209 = vpop.f32.mrb[0].mxu0
        %1210 = vmatprep.mubr.f32.mxu0 0.0
        %1211 = vmatmul.mubr.f32.gmra.mrb[0].mxu0 %v1091
        %v1212 = vpop.f32.mrb[0].mxu0
        %v1213 = vadd.f32 0.0, %v1212
        %v1214 = vpop.f32.mrb[0].mxu0
        %1215 = vmatprep.mubr.f32.mxu0 0.0
        %1216 = vmatmul.mubr.f32.gmra.mrb[0].mxu0 %v1094
        %v1217 = vpop.f32.mrb[0].mxu0
        %v1218 = vadd.f32 0.0, %v1217
        %v1219 = vpop.f32.mrb[0].mxu0
        %1220 = vmatprep.mubr.f32.mxu0 0.0
        %1221 = vmatmul.mubr.f32.gmra.mrb[0].mxu0 %v1097
        %v1222 = vpop.f32.mrb[0].mxu0
        %v1223 = vadd.f32 0.0, %v1222
        %v1224 = vpop.f32.mrb[0].mxu0
        %1225 = vmatprep.mubr.f32.mxu0 0.0
        %1226 = vmatmul.mubr.f32.gmra.mrb[0].mxu0 %v1100
        %v1227 = vpop.f32.mrb[0].mxu0
        %v1228 = vadd.f32 0.0, %v1227
        %v1229 = vpop.f32.mrb[0].mxu0
        %1230 = vmatprep.mubr.f32.mxu0 0.0
        %1231 = vmatmul.mubr.f32.gmra.mrb[0].mxu0 %v1103
        %v1232 = vpop.f32.mrb[0].mxu0
        %v1233 = vadd.f32 0.0, %v1232
        %v1234 = vpop.f32.mrb[0].mxu0
        %1235 = vmatprep.mubr.f32.mxu0 0.0
        %1236 = vmatmul.mubr.f32.gmra.mrb[0].mxu0 %v1106
        %v1237 = vpop.f32.mrb[0].mxu0
        %v1238 = vadd.f32 0.0, %v1237
        %v1239 = vpop.f32.mrb[0].mxu0
        %1240 = vmatprep.mubr.f32.mxu0 0.0
        %1241 = vmatmul.mubr.f32.gmra.mrb[0].mxu0 %v1109
        %v1242 = vpop.f32.mrb[0].mxu0
        %v1243 = vadd.f32 0.0, %v1242
        %v1244 = vpop.f32.mrb[0].mxu0
        %1245 = vmatprep.mubr.f32.mxu0 0.0
        %1246 = vmatmul.mubr.f32.gmra.mrb[0].mxu0 %v1112
        %v1247 = vpop.f32.mrb[0].mxu0
        %v1248 = vadd.f32 0.0, %v1247
        %v1249 = vpop.f32.mrb[0].mxu0
        %1250 = vmatprep.mubr.f32.mxu0 0.0
        %1251 = vmatmul.mubr.f32.gmra.mrb[0].mxu0 %v1115
        %v1252 = vpop.f32.mrb[0].mxu0
        %v1253 = vadd.f32 0.0, %v1252
        %v1254 = vpop.f32.mrb[0].mxu0
        %1255 = vmatprep.mubr.f32.mxu0 0.0
        %1256 = vmatmul.mubr.f32.gmra.mrb[0].mxu0 %v1118
        %v1257 = vpop.f32.mrb[0].mxu0
        %v1258 = vadd.f32 0.0, %v1257
        %v1259 = vpop.f32.mrb[0].mxu0
        %1260 = vmatprep.mubr.f32.mxu0 0.0
        %1261 = vmatmul.mubr.f32.gmra.mrb[0].mxu0 %v1121
        %v1262 = vpop.f32.mrb[0].mxu0
        %v1263 = vadd.f32 0.0, %v1262
        %v1264 = vpop.f32.mrb[0].mxu0
        %1265 = vmatprep.mubr.f32.mxu0 0.0
        %1266 = vmatmul.mubr.f32.gmra.mrb[0].mxu0 %v1124
        %v1267 = vpop.f32.mrb[0].mxu0
        %v1268 = vadd.f32 0.0, %v1267
        %v1269 = vpop.f32.mrb[0].mxu0
        %1270 = vdwg.mxu0
        %v1271 = vmul.f32 %v1193, 0.125
        %v1272 = vmul.f32 %v1198, 0.125
        %v1273 = vmul.f32 %v1203, 0.125
        %v1274 = vmul.f32 %v1208, 0.125
        %v1275 = vmul.f32 %v1213, 0.125
        %v1276 = vmul.f32 %v1218, 0.125
        %v1277 = vmul.f32 %v1223, 0.125
        %v1278 = vmul.f32 %v1228, 0.125
        %v1279 = vmul.f32 %v1233, 0.125
        %v1280 = vmul.f32 %v1238, 0.125
        %v1281 = vmul.f32 %v1243, 0.125
        %v1282 = vmul.f32 %v1248, 0.125
        %v1283 = vmul.f32 %v1253, 0.125
        %v1284 = vmul.f32 %v1258, 0.125
        %v1285 = vmul.f32 %v1263, 0.125
        %v1286 = vmul.f32 %v1268, 0.125
        %v1287 = vld [vmem:[%s4] sm:$0xff]
        %v1288 = vld [vmem:[%s4 + $0x8] sm:$0xff]
        %v1289 = vld [vmem:[%s4 + $0x10] sm:$0xff]
        %v1290 = vld [vmem:[%s4 + $0x18] sm:$0xff]
        %v1291 = vld [vmem:[%s4 + $0x20] sm:$0xff]
        %v1292 = vld [vmem:[%s4 + $0x28] sm:$0xff]
        %v1293 = vld [vmem:[%s4 + $0x30] sm:$0xff]
        %v1294 = vld [vmem:[%s4 + $0x38] sm:$0xff]
        %v1295 = vld [vmem:[%s4 + $0x40] sm:$0xff]
        %v1296 = vld [vmem:[%s4 + $0x48] sm:$0xff]
        %v1297 = vld [vmem:[%s4 + $0x50] sm:$0xff]
        %v1298 = vld [vmem:[%s4 + $0x58] sm:$0xff]
        %v1299 = vld [vmem:[%s4 + $0x60] sm:$0xff]
        %v1300 = vld [vmem:[%s4 + $0x68] sm:$0xff]
        %v1301 = vld [vmem:[%s4 + $0x70] sm:$0xff]
        %v1302 = vld [vmem:[%s4 + $0x78] sm:$0xff]
        %v1303 = vadd.f32 %v1271, %v1287
        %v1304 = vadd.f32 %v1272, %v1288
        %v1305 = vadd.f32 %v1273, %v1289
        %v1306 = vadd.f32 %v1274, %v1290
        %v1307 = vadd.f32 %v1275, %v1291
        %v1308 = vadd.f32 %v1276, %v1292
        %v1309 = vadd.f32 %v1277, %v1293
        %v1310 = vadd.f32 %v1278, %v1294
        %v1311 = vadd.f32 %v1279, %v1295
        %v1312 = vadd.f32 %v1280, %v1296
        %v1313 = vadd.f32 %v1281, %v1297
        %v1314 = vadd.f32 %v1282, %v1298
        %v1315 = vadd.f32 %v1283, %v1299
        %v1316 = vadd.f32 %v1284, %v1300
        %v1317 = vadd.f32 %v1285, %v1301
        %v1318 = vadd.f32 %v1286, %v1302
        %v1319 = vmax.f32 %v1303, %v1307
        %v1320 = vmax.f32 %v1304, %v1308
        %v1321 = vmax.f32 %v1305, %v1309
        %v1322 = vmax.f32 %v1306, %v1310
        %v1323 = vmax.f32 %v1319, %v1311
        %v1324 = vmax.f32 %v1320, %v1312
        %v1325 = vmax.f32 %v1321, %v1313
        %v1326 = vmax.f32 %v1322, %v1314
        %v1327 = vmax.f32 %v1323, %v1315
        %v1328 = vmax.f32 %v1324, %v1316
        %v1329 = vmax.f32 %v1325, %v1317
        %v1330 = vmax.f32 %v1326, %v1318
        %v1331 = vmax.f32 %v1327, %v1328
        %v1332 = vmax.f32 %v1329, %v1330
        %v1333 = vmax.f32 %v1331, %v1332
        %v1334 = vrot.slane %v1333, 4
        %v1335 = vmax.f32 %v1333, %v1334
        %v1336 = vrot.slane %v1335, 2
        %v1337 = vmax.f32 %v1335, %v1336
        %v1338 = vrot.slane %v1337, 1
        %v1339 = vmax.f32 %v1337, %v1338
        %v1340 = vsub.f32 %v1303, %v1339
        %v1341 = vsub.f32 %v1304, %v1339
        %v1342 = vsub.f32 %v1305, %v1339
        %v1343 = vsub.f32 %v1306, %v1339
        %v1344 = vsub.f32 %v1307, %v1339
        %v1345 = vsub.f32 %v1308, %v1339
        %v1346 = vsub.f32 %v1309, %v1339
        %v1347 = vsub.f32 %v1310, %v1339
        %v1348 = vsub.f32 %v1311, %v1339
        %v1349 = vsub.f32 %v1312, %v1339
        %v1350 = vsub.f32 %v1313, %v1339
        %v1351 = vsub.f32 %v1314, %v1339
        %v1352 = vsub.f32 %v1315, %v1339
        %v1353 = vsub.f32 %v1316, %v1339
        %v1354 = vsub.f32 %v1317, %v1339
        %v1355 = vsub.f32 %v1318, %v1339
        %v1356 = vmul.f32 %v1340, 1.442695
        %v1357 = vpow.pop %v1356
        %v1358 = vmul.f32 %v1341, 1.442695
        %v1359 = vpow.pop %v1358
        %v1360 = vmul.f32 %v1342, 1.442695
        %v1361 = vpow.pop %v1360
        %v1362 = vmul.f32 %v1343, 1.442695
        %v1363 = vpow.pop %v1362
        %v1364 = vmul.f32 %v1344, 1.442695
        %v1365 = vpow.pop %v1364
        %v1366 = vmul.f32 %v1345, 1.442695
        %v1367 = vpow.pop %v1366
        %v1368 = vmul.f32 %v1346, 1.442695
        %v1369 = vpow.pop %v1368
        %v1370 = vmul.f32 %v1347, 1.442695
        %v1371 = vpow.pop %v1370
        %v1372 = vmul.f32 %v1348, 1.442695
        %v1373 = vpow.pop %v1372
        %v1374 = vmul.f32 %v1349, 1.442695
        %v1375 = vpow.pop %v1374
        %v1376 = vmul.f32 %v1350, 1.442695
        %v1377 = vpow.pop %v1376
        %v1378 = vmul.f32 %v1351, 1.442695
        %v1379 = vpow.pop %v1378
        %v1380 = vmul.f32 %v1352, 1.442695
        %v1381 = vpow.pop %v1380
        %v1382 = vmul.f32 %v1353, 1.442695
        %v1383 = vpow.pop %v1382
        %v1384 = vmul.f32 %v1354, 1.442695
        %v1385 = vpow.pop %v1384
        %v1386 = vmul.f32 %v1355, 1.442695
        %v1387 = vpow.pop %v1386
        %v1388 = vadd.f32 %v1357, %v1359
        %v1389 = vadd.f32 %v1388, %v1361
        %v1390 = vadd.f32 %v1389, %v1363
        %v1391 = vadd.f32 %v1390, %v1365
        %v1392 = vadd.f32 %v1391, %v1367
        %v1393 = vadd.f32 %v1392, %v1369
        %v1394 = vadd.f32 %v1393, %v1371
        %v1395 = vadd.f32 %v1394, %v1373
        %v1396 = vadd.f32 %v1395, %v1375
        %v1397 = vadd.f32 %v1396, %v1377
        %v1398 = vadd.f32 %v1397, %v1379
        %v1399 = vadd.f32 %v1398, %v1381
        %v1400 = vadd.f32 %v1399, %v1383
        %v1401 = vadd.f32 %v1400, %v1385
        %v1402 = vadd.f32 %v1401, %v1387
        %v1403 = vrot.slane %v1402, 4
        %v1404 = vadd.f32 %v1402, %v1403
        %v1405 = vrot.slane %v1404, 2
        %v1406 = vadd.f32 %v1404, %v1405
        %v1407 = vrot.slane %v1406, 1
        %v1408 = vadd.f32 %v1406, %v1407
        %v1409 = vrcp.pop %v1408
        %v1410 = vld [vmem:[%s3] sm:$0xff]
        %v1411 = vld [vmem:[%s3 + $0x8] sm:$0xff]
        %v1412 = vld [vmem:[%s3 + $0x10] sm:$0xff]
        %v1413 = vld [vmem:[%s3 + $0x18] sm:$0xff]
        %v1414 = vld [vmem:[%s3 + $0x20] sm:$0xff]
        %v1415 = vld [vmem:[%s3 + $0x28] sm:$0xff]
        %v1416 = vld [vmem:[%s3 + $0x30] sm:$0xff]
        %v1417 = vld [vmem:[%s3 + $0x38] sm:$0xff]
        %v1418 = vld [vmem:[%s3 + $0x40] sm:$0xff]
        %v1419 = vld [vmem:[%s3 + $0x48] sm:$0xff]
        %v1420 = vld [vmem:[%s3 + $0x50] sm:$0xff]
        %v1421 = vld [vmem:[%s3 + $0x58] sm:$0xff]
        %v1422 = vld [vmem:[%s3 + $0x60] sm:$0xff]
        %v1423 = vld [vmem:[%s3 + $0x68] sm:$0xff]
        %v1424 = vld [vmem:[%s3 + $0x70] sm:$0xff]
        %v1425 = vld [vmem:[%s3 + $0x78] sm:$0xff]
        %v1426 = vmul.f32 %v1357, %v1409
        %v1427 = vmul.f32 %v1359, %v1409
        %v1428 = vmul.f32 %v1361, %v1409
        %v1429 = vmul.f32 %v1363, %v1409
        %v1430 = vmul.f32 %v1365, %v1409
        %v1431 = vmul.f32 %v1367, %v1409
        %v1432 = vmul.f32 %v1369, %v1409
        %v1433 = vmul.f32 %v1371, %v1409
        %v1434 = vmul.f32 %v1373, %v1409
        %v1435 = vmul.f32 %v1375, %v1409
        %v1436 = vmul.f32 %v1377, %v1409
        %v1437 = vmul.f32 %v1379, %v1409
        %v1438 = vmul.f32 %v1381, %v1409
        %v1439 = vmul.f32 %v1383, %v1409
        %v1440 = vmul.f32 %v1385, %v1409
        %v1441 = vmul.f32 %v1387, %v1409
        %v1442 = vstv %s377
        %v1443 = vmul.f32 %v1442, %v1426
        %v1444 = vmul.f32 %v1442, %v1427
        %v1445 = vmul.f32 %v1442, %v1428
        %v1446 = vmul.f32 %v1442, %v1429
        %v1447 = vmul.f32 %v1442, %v1430
        %v1448 = vmul.f32 %v1442, %v1431
        %v1449 = vmul.f32 %v1442, %v1432
        %v1450 = vmul.f32 %v1442, %v1433
        %v1451 = vmul.f32 %v1442, %v1434
        %v1452 = vmul.f32 %v1442, %v1435
        %v1453 = vmul.f32 %v1442, %v1436
        %v1454 = vmul.f32 %v1442, %v1437
        %v1455 = vmul.f32 %v1442, %v1438
        %v1456 = vmul.f32 %v1442, %v1439
        %v1457 = vmul.f32 %v1442, %v1440
        %v1458 = vmul.f32 %v1442, %v1441
        %v1459 = vadd.f32 %v1410, %v1443
        %v1460 = vadd.f32 %v1411, %v1444
        %v1461 = vadd.f32 %v1412, %v1445
        %v1462 = vadd.f32 %v1413, %v1446
        %v1463 = vadd.f32 %v1414, %v1447
        %v1464 = vadd.f32 %v1415, %v1448
        %v1465 = vadd.f32 %v1416, %v1449
        %v1466 = vadd.f32 %v1417, %v1450
        %v1467 = vadd.f32 %v1418, %v1451
        %v1468 = vadd.f32 %v1419, %v1452
        %v1469 = vadd.f32 %v1420, %v1453
        %v1470 = vadd.f32 %v1421, %v1454
        %v1471 = vadd.f32 %v1422, %v1455
        %v1472 = vadd.f32 %v1423, %v1456
        %v1473 = vadd.f32 %v1424, %v1457
        %v1474 = vadd.f32 %v1425, %v1458
        %v1475 = vld [vmem:[#allocation2 + $0x40] sm:$0xff]
        %1476 = vst.msk [vmem:[#allocation3] sm:$0xff] %vm968, %v1475
        %v1477 = vld [vmem:[#allocation2 + $0x48] sm:$0xff]
        %1479 = vrot.lane.b32.xlu0 %v1477, 16
        %v1480 = vpop.permute.xlu0 %1479
        %1482 = vst.msk [vmem:[#allocation3] sm:$0xff] %vm1000, %v1480
        %v1483 = vld [vmem:[#allocation2 + $0x50] sm:$0xff]
        %1485 = vrot.lane.b32.xlu0 %v1483, 32
        %v1486 = vpop.permute.xlu0 %1485
        %1488 = vst.msk [vmem:[#allocation3] sm:$0xff] %vm1007, %v1486
        %v1489 = vld [vmem:[#allocation2 + $0x58] sm:$0xff]
        %1491 = vrot.lane.b32.xlu0 %v1489, 48
        %v1492 = vpop.permute.xlu0 %1491
        %1494 = vst.msk [vmem:[#allocation3] sm:$0xff] %vm1014, %v1492
        %v1495 = vld [vmem:[#allocation2 + $0x60] sm:$0xff]
        %1497 = vrot.lane.b32.xlu0 %v1495, 64
        %v1498 = vpop.permute.xlu0 %1497
        %1500 = vst.msk [vmem:[#allocation3] sm:$0xff] %vm1021, %v1498
        %v1501 = vld [vmem:[#allocation2 + $0x68] sm:$0xff]
        %1503 = vrot.lane.b32.xlu0 %v1501, 80
        %v1504 = vpop.permute.xlu0 %1503
        %1506 = vst.msk [vmem:[#allocation3] sm:$0xff] %vm1028, %v1504
        %v1507 = vld [vmem:[#allocation2 + $0x70] sm:$0xff]
        %1509 = vrot.lane.b32.xlu0 %v1507, 96
        %v1510 = vpop.permute.xlu0 %1509
        %1512 = vst.msk [vmem:[#allocation3] sm:$0xff] %vm1035, %v1510
        %v1513 = vld [vmem:[#allocation2 + $0x78] sm:$0xff]
        %1515 = vrot.lane.b32.xlu0 %v1513, 112
        %v1516 = vpop.permute.xlu0 %1515
        %1518 = vst.msk [vmem:[#allocation3] sm:$0xff] %vm1042, %v1516
        %v1519 = vld [vmem:[#allocation3] sm:$0xff]
        %1520 = vxpose.xlu0.b32.start [1/16] %v515, 128
        %1521 = vxpose.xlu0.b32.cont [2/16] 0.0, 128
        %1522 = vxpose.xlu0.b32.cont [3/16] 0.0, 128
        %1523 = vxpose.xlu0.b32.cont [4/16] 0.0, 128
        %1524 = vxpose.xlu0.b32.cont [5/16] 0.0, 128
        %1525 = vxpose.xlu0.b32.cont [6/16] 0.0, 128
        %1526 = vxpose.xlu0.b32.cont [7/16] 0.0, 128
        %1527 = vxpose.xlu0.b32.cont [8/16] 0.0, 128
        %1528 = vxpose.xlu0.b32.cont [9/16] 0.0, 128
        %1529 = vxpose.xlu0.b32.cont [10/16] 0.0, 128
        %1530 = vxpose.xlu0.b32.cont [11/16] 0.0, 128
        %1531 = vxpose.xlu0.b32.cont [12/16] 0.0, 128
        %1532 = vxpose.xlu0.b32.cont [13/16] 0.0, 128
        %1533 = vxpose.xlu0.b32.cont [14/16] 0.0, 128
        %1534 = vxpose.xlu0.b32.cont [15/16] 0.0, 128
        %1535 = vxpose.xlu0.b32.end [16/16] 0.0, 128
        %v1536 = vpop.trf.xlu0
        %v1537 = vpop.trf.xlu0
        %v1538 = vpop.trf.xlu0
        %v1539 = vpop.trf.xlu0
        %v1540 = vpop.trf.xlu0
        %v1541 = vpop.trf.xlu0
        %v1542 = vpop.trf.xlu0
        %v1543 = vpop.trf.xlu0
        %v1544 = vpop.trf.xlu0
        %v1545 = vpop.trf.xlu0
        %v1546 = vpop.trf.xlu0
        %v1547 = vpop.trf.xlu0
        %v1548 = vpop.trf.xlu0
        %v1549 = vpop.trf.xlu0
        %v1550 = vpop.trf.xlu0
        %v1551 = vpop.trf.xlu0
        %v1553 = vsel %vm1077, %v1536, 0
        %v1556 = vsel %vm1077, %v1537, 0
        %v1559 = vsel %vm1077, %v1538, 0
        %v1562 = vsel %vm1077, %v1539, 0
        %v1565 = vsel %vm1077, %v1540, 0
        %v1568 = vsel %vm1077, %v1541, 0
        %v1571 = vsel %vm1077, %v1542, 0
        %v1574 = vsel %vm1077, %v1543, 0
        %v1577 = vsel %vm1077, %v1544, 0
        %v1580 = vsel %vm1077, %v1545, 0
        %v1583 = vsel %vm1077, %v1546, 0
        %v1586 = vsel %vm1077, %v1547, 0
        %v1589 = vsel %vm1077, %v1548, 0
        %v1592 = vsel %vm1077, %v1549, 0
        %v1595 = vsel %vm1077, %v1550, 0
        %v1598 = vsel %vm1077, %v1551, 0
        %1600 = vmatprep.subr.mxu0 0.0
        %1601 = vmatpush1.msra.mxu0 %v1519
        %1602 = vmatprep.subr.mxu0 0.0
        %1603 = vmatpush1.msra.mxu0 0.0
        %1604 = vmatprep.subr.mxu0 0.0
        %1605 = vmatpush1.msra.mxu0 0.0
        %1606 = vmatprep.subr.mxu0 0.0
        %1607 = vmatpush1.msra.mxu0 0.0
        %1608 = vmatprep.subr.mxu0 0.0
        %1609 = vmatpush1.msra.mxu0 0.0
        %1610 = vmatprep.subr.mxu0 0.0
        %1611 = vmatpush1.msra.mxu0 0.0
        %1612 = vmatprep.subr.mxu0 0.0
        %1613 = vmatpush1.msra.mxu0 0.0
        %1614 = vmatprep.subr.mxu0 0.0
        %1615 = vmatpush1.msra.mxu0 0.0
        %1616 = vmatprep.subr.mxu0 0.0
        %1617 = vmatpush1.msra.mxu0 0.0
        %1618 = vmatprep.subr.mxu0 0.0
        %1619 = vmatpush1.msra.mxu0 0.0
        %1620 = vmatprep.subr.mxu0 0.0
        %1621 = vmatpush1.msra.mxu0 0.0
        %1622 = vmatprep.subr.mxu0 0.0
        %1623 = vmatpush1.msra.mxu0 0.0
        %1624 = vmatprep.subr.mxu0 0.0
        %1625 = vmatpush1.msra.mxu0 0.0
        %1626 = vmatprep.subr.mxu0 0.0
        %1627 = vmatpush1.msra.mxu0 0.0
        %1628 = vmatprep.subr.mxu0 0.0
        %1629 = vmatpush1.msra.mxu0 0.0
        %1630 = vmatprep.subr.mxu0 0.0
        %1631 = vmatpush1.msra.mxu0 0.0
        %1632 = vmatprep.subr.mxu0 0.0
        %1633 = vmatpush1.msra.mxu0 0.0
        %1634 = vmatprep.subr.mxu0 0.0
        %1635 = vmatpush1.msra.mxu0 0.0
        %1636 = vmatprep.subr.mxu0 0.0
        %1637 = vmatpush1.msra.mxu0 0.0
        %1638 = vmatprep.subr.mxu0 0.0
        %1639 = vmatpush1.msra.mxu0 0.0
        %1640 = vmatprep.subr.mxu0 0.0
        %1641 = vmatpush1.msra.mxu0 0.0
        %1642 = vmatprep.subr.mxu0 0.0
        %1643 = vmatpush1.msra.mxu0 0.0
        %1644 = vmatprep.subr.mxu0 0.0
        %1645 = vmatpush1.msra.mxu0 0.0
        %1646 = vmatprep.subr.mxu0 0.0
        %1647 = vmatpush1.msra.mxu0 0.0
        %1648 = vmatprep.subr.mxu0 0.0
        %1649 = vmatpush1.msra.mxu0 0.0
        %1650 = vmatprep.subr.mxu0 0.0
        %1651 = vmatpush1.msra.mxu0 0.0
        %1652 = vmatprep.subr.mxu0 0.0
        %1653 = vmatpush1.msra.mxu0 0.0
        %1654 = vmatprep.subr.mxu0 0.0
        %1655 = vmatpush1.msra.mxu0 0.0
        %1656 = vmatprep.subr.mxu0 0.0
        %1657 = vmatpush1.msra.mxu0 0.0
        %1658 = vmatprep.subr.mxu0 0.0
        %1659 = vmatpush1.msra.mxu0 0.0
        %1660 = vmatprep.subr.mxu0 0.0
        %1661 = vmatpush1.msra.mxu0 0.0
        %1662 = vmatprep.subr.mxu0 0.0
        %1663 = vmatpush1.msra.mxu0 0.0
        %1664 = vmatprep.mubr.f32.mxu0 0.0
        %1665 = vmatmul.mubr.f32.gmra.mrb[0].mxu0 %v1553
        %v1666 = vpop.f32.mrb[0].mxu0
        %v1667 = vadd.f32 0.0, %v1666
        %v1668 = vpop.f32.mrb[0].mxu0
        %1669 = vmatprep.mubr.f32.mxu0 0.0
        %1670 = vmatmul.mubr.f32.gmra.mrb[0].mxu0 %v1556
        %v1671 = vpop.f32.mrb[0].mxu0
        %v1672 = vadd.f32 0.0, %v1671
        %v1673 = vpop.f32.mrb[0].mxu0
        %1674 = vmatprep.mubr.f32.mxu0 0.0
        %1675 = vmatmul.mubr.f32.gmra.mrb[0].mxu0 %v1559
        %v1676 = vpop.f32.mrb[0].mxu0
        %v1677 = vadd.f32 0.0, %v1676
        %v1678 = vpop.f32.mrb[0].mxu0
        %1679 = vmatprep.mubr.f32.mxu0 0.0
        %1680 = vmatmul.mubr.f32.gmra.mrb[0].mxu0 %v1562
        %v1681 = vpop.f32.mrb[0].mxu0
        %v1682 = vadd.f32 0.0, %v1681
        %v1683 = vpop.f32.mrb[0].mxu0
        %1684 = vmatprep.mubr.f32.mxu0 0.0
        %1685 = vmatmul.mubr.f32.gmra.mrb[0].mxu0 %v1565
        %v1686 = vpop.f32.mrb[0].mxu0
        %v1687 = vadd.f32 0.0, %v1686
        %v1688 = vpop.f32.mrb[0].mxu0
        %1689 = vmatprep.mubr.f32.mxu0 0.0
        %1690 = vmatmul.mubr.f32.gmra.mrb[0].mxu0 %v1568
        %v1691 = vpop.f32.mrb[0].mxu0
        %v1692 = vadd.f32 0.0, %v1691
        %v1693 = vpop.f32.mrb[0].mxu0
        %1694 = vmatprep.mubr.f32.mxu0 0.0
        %1695 = vmatmul.mubr.f32.gmra.mrb[0].mxu0 %v1571
        %v1696 = vpop.f32.mrb[0].mxu0
        %v1697 = vadd.f32 0.0, %v1696
        %v1698 = vpop.f32.mrb[0].mxu0
        %1699 = vmatprep.mubr.f32.mxu0 0.0
        %1700 = vmatmul.mubr.f32.gmra.mrb[0].mxu0 %v1574
        %v1701 = vpop.f32.mrb[0].mxu0
        %v1702 = vadd.f32 0.0, %v1701
        %v1703 = vpop.f32.mrb[0].mxu0
        %1704 = vmatprep.mubr.f32.mxu0 0.0
        %1705 = vmatmul.mubr.f32.gmra.mrb[0].mxu0 %v1577
        %v1706 = vpop.f32.mrb[0].mxu0
        %v1707 = vadd.f32 0.0, %v1706
        %v1708 = vpop.f32.mrb[0].mxu0
        %1709 = vmatprep.mubr.f32.mxu0 0.0
        %1710 = vmatmul.mubr.f32.gmra.mrb[0].mxu0 %v1580
        %v1711 = vpop.f32.mrb[0].mxu0
        %v1712 = vadd.f32 0.0, %v1711
        %v1713 = vpop.f32.mrb[0].mxu0
        %1714 = vmatprep.mubr.f32.mxu0 0.0
        %1715 = vmatmul.mubr.f32.gmra.mrb[0].mxu0 %v1583
        %v1716 = vpop.f32.mrb[0].mxu0
        %v1717 = vadd.f32 0.0, %v1716
        %v1718 = vpop.f32.mrb[0].mxu0
        %1719 = vmatprep.mubr.f32.mxu0 0.0
        %1720 = vmatmul.mubr.f32.gmra.mrb[0].mxu0 %v1586
        %v1721 = vpop.f32.mrb[0].mxu0
        %v1722 = vadd.f32 0.0, %v1721
        %v1723 = vpop.f32.mrb[0].mxu0
        %1724 = vmatprep.mubr.f32.mxu0 0.0
        %1725 = vmatmul.mubr.f32.gmra.mrb[0].mxu0 %v1589
        %v1726 = vpop.f32.mrb[0].mxu0
        %v1727 = vadd.f32 0.0, %v1726
        %v1728 = vpop.f32.mrb[0].mxu0
        %1729 = vmatprep.mubr.f32.mxu0 0.0
        %1730 = vmatmul.mubr.f32.gmra.mrb[0].mxu0 %v1592
        %v1731 = vpop.f32.mrb[0].mxu0
        %v1732 = vadd.f32 0.0, %v1731
        %v1733 = vpop.f32.mrb[0].mxu0
        %1734 = vmatprep.mubr.f32.mxu0 0.0
        %1735 = vmatmul.mubr.f32.gmra.mrb[0].mxu0 %v1595
        %v1736 = vpop.f32.mrb[0].mxu0
        %v1737 = vadd.f32 0.0, %v1736
        %v1738 = vpop.f32.mrb[0].mxu0
        %1739 = vmatprep.mubr.f32.mxu0 0.0
        %1740 = vmatmul.mubr.f32.gmra.mrb[0].mxu0 %v1598
        %v1741 = vpop.f32.mrb[0].mxu0
        %v1742 = vadd.f32 0.0, %v1741
        %v1743 = vpop.f32.mrb[0].mxu0
        %1744 = vdwg.mxu0
        %v1745 = vmul.f32 %v1667, 0.125
        %v1746 = vmul.f32 %v1672, 0.125
        %v1747 = vmul.f32 %v1677, 0.125
        %v1748 = vmul.f32 %v1682, 0.125
        %v1749 = vmul.f32 %v1687, 0.125
        %v1750 = vmul.f32 %v1692, 0.125
        %v1751 = vmul.f32 %v1697, 0.125
        %v1752 = vmul.f32 %v1702, 0.125
        %v1753 = vmul.f32 %v1707, 0.125
        %v1754 = vmul.f32 %v1712, 0.125
        %v1755 = vmul.f32 %v1717, 0.125
        %v1756 = vmul.f32 %v1722, 0.125
        %v1757 = vmul.f32 %v1727, 0.125
        %v1758 = vmul.f32 %v1732, 0.125
        %v1759 = vmul.f32 %v1737, 0.125
        %v1760 = vmul.f32 %v1742, 0.125
        %v1761 = vld [vmem:[%s4] sm:$0xff]
        %v1762 = vld [vmem:[%s4 + $0x8] sm:$0xff]
        %v1763 = vld [vmem:[%s4 + $0x10] sm:$0xff]
        %v1764 = vld [vmem:[%s4 + $0x18] sm:$0xff]
        %v1765 = vld [vmem:[%s4 + $0x20] sm:$0xff]
        %v1766 = vld [vmem:[%s4 + $0x28] sm:$0xff]
        %v1767 = vld [vmem:[%s4 + $0x30] sm:$0xff]
        %v1768 = vld [vmem:[%s4 + $0x38] sm:$0xff]
        %v1769 = vld [vmem:[%s4 + $0x40] sm:$0xff]
        %v1770 = vld [vmem:[%s4 + $0x48] sm:$0xff]
        %v1771 = vld [vmem:[%s4 + $0x50] sm:$0xff]
        %v1772 = vld [vmem:[%s4 + $0x58] sm:$0xff]
        %v1773 = vld [vmem:[%s4 + $0x60] sm:$0xff]
        %v1774 = vld [vmem:[%s4 + $0x68] sm:$0xff]
        %v1775 = vld [vmem:[%s4 + $0x70] sm:$0xff]
        %v1776 = vld [vmem:[%s4 + $0x78] sm:$0xff]
        %v1777 = vadd.f32 %v1745, %v1761
        %v1778 = vadd.f32 %v1746, %v1762
        %v1779 = vadd.f32 %v1747, %v1763
        %v1780 = vadd.f32 %v1748, %v1764
        %v1781 = vadd.f32 %v1749, %v1765
        %v1782 = vadd.f32 %v1750, %v1766
        %v1783 = vadd.f32 %v1751, %v1767
        %v1784 = vadd.f32 %v1752, %v1768
        %v1785 = vadd.f32 %v1753, %v1769
        %v1786 = vadd.f32 %v1754, %v1770
        %v1787 = vadd.f32 %v1755, %v1771
        %v1788 = vadd.f32 %v1756, %v1772
        %v1789 = vadd.f32 %v1757, %v1773
        %v1790 = vadd.f32 %v1758, %v1774
        %v1791 = vadd.f32 %v1759, %v1775
        %v1792 = vadd.f32 %v1760, %v1776
        %v1793 = vmax.f32 %v1777, %v1781
        %v1794 = vmax.f32 %v1778, %v1782
        %v1795 = vmax.f32 %v1779, %v1783
        %v1796 = vmax.f32 %v1780, %v1784
        %v1797 = vmax.f32 %v1793, %v1785
        %v1798 = vmax.f32 %v1794, %v1786
        %v1799 = vmax.f32 %v1795, %v1787
        %v1800 = vmax.f32 %v1796, %v1788
        %v1801 = vmax.f32 %v1797, %v1789
        %v1802 = vmax.f32 %v1798, %v1790
        %v1803 = vmax.f32 %v1799, %v1791
        %v1804 = vmax.f32 %v1800, %v1792
        %v1805 = vmax.f32 %v1801, %v1802
        %v1806 = vmax.f32 %v1803, %v1804
        %v1807 = vmax.f32 %v1805, %v1806
        %v1808 = vrot.slane %v1807, 4
        %v1809 = vmax.f32 %v1807, %v1808
        %v1810 = vrot.slane %v1809, 2
        %v1811 = vmax.f32 %v1809, %v1810
        %v1812 = vrot.slane %v1811, 1
        %v1813 = vmax.f32 %v1811, %v1812
        %v1814 = vsub.f32 %v1777, %v1813
        %v1815 = vsub.f32 %v1778, %v1813
        %v1816 = vsub.f32 %v1779, %v1813
        %v1817 = vsub.f32 %v1780, %v1813
        %v1818 = vsub.f32 %v1781, %v1813
        %v1819 = vsub.f32 %v1782, %v1813
        %v1820 = vsub.f32 %v1783, %v1813
        %v1821 = vsub.f32 %v1784, %v1813
        %v1822 = vsub.f32 %v1785, %v1813
        %v1823 = vsub.f32 %v1786, %v1813
        %v1824 = vsub.f32 %v1787, %v1813
        %v1825 = vsub.f32 %v1788, %v1813
        %v1826 = vsub.f32 %v1789, %v1813
        %v1827 = vsub.f32 %v1790, %v1813
        %v1828 = vsub.f32 %v1791, %v1813
        %v1829 = vsub.f32 %v1792, %v1813
        %v1830 = vmul.f32 %v1814, 1.442695
        %v1831 = vpow.pop %v1830
        %v1832 = vmul.f32 %v1815, 1.442695
        %v1833 = vpow.pop %v1832
        %v1834 = vmul.f32 %v1816, 1.442695
        %v1835 = vpow.pop %v1834
        %v1836 = vmul.f32 %v1817, 1.442695
        %v1837 = vpow.pop %v1836
        %v1838 = vmul.f32 %v1818, 1.442695
        %v1839 = vpow.pop %v1838
        %v1840 = vmul.f32 %v1819, 1.442695
        %v1841 = vpow.pop %v1840
        %v1842 = vmul.f32 %v1820, 1.442695
        %v1843 = vpow.pop %v1842
        %v1844 = vmul.f32 %v1821, 1.442695
        %v1845 = vpow.pop %v1844
        %v1846 = vmul.f32 %v1822, 1.442695
        %v1847 = vpow.pop %v1846
        %v1848 = vmul.f32 %v1823, 1.442695
        %v1849 = vpow.pop %v1848
        %v1850 = vmul.f32 %v1824, 1.442695
        %v1851 = vpow.pop %v1850
        %v1852 = vmul.f32 %v1825, 1.442695
        %v1853 = vpow.pop %v1852
        %v1854 = vmul.f32 %v1826, 1.442695
        %v1855 = vpow.pop %v1854
        %v1856 = vmul.f32 %v1827, 1.442695
        %v1857 = vpow.pop %v1856
        %v1858 = vmul.f32 %v1828, 1.442695
        %v1859 = vpow.pop %v1858
        %v1860 = vmul.f32 %v1829, 1.442695
        %v1861 = vpow.pop %v1860
        %v1862 = vadd.f32 %v1831, %v1833
        %v1863 = vadd.f32 %v1862, %v1835
        %v1864 = vadd.f32 %v1863, %v1837
        %v1865 = vadd.f32 %v1864, %v1839
        %v1866 = vadd.f32 %v1865, %v1841
        %v1867 = vadd.f32 %v1866, %v1843
        %v1868 = vadd.f32 %v1867, %v1845
        %v1869 = vadd.f32 %v1868, %v1847
        %v1870 = vadd.f32 %v1869, %v1849
        %v1871 = vadd.f32 %v1870, %v1851
        %v1872 = vadd.f32 %v1871, %v1853
        %v1873 = vadd.f32 %v1872, %v1855
        %v1874 = vadd.f32 %v1873, %v1857
        %v1875 = vadd.f32 %v1874, %v1859
        %v1876 = vadd.f32 %v1875, %v1861
        %v1877 = vrot.slane %v1876, 4
        %v1878 = vadd.f32 %v1876, %v1877
        %v1879 = vrot.slane %v1878, 2
        %v1880 = vadd.f32 %v1878, %v1879
        %v1881 = vrot.slane %v1880, 1
        %v1882 = vadd.f32 %v1880, %v1881
        %v1883 = vrcp.pop %v1882
        %s1884 = scalar_lea.vmem %s3, 128
        %v1885 = vld [vmem:[%s1884] sm:$0xff]
        %v1886 = vld [vmem:[%s1884 + $0x8] sm:$0xff]
        %v1887 = vld [vmem:[%s1884 + $0x10] sm:$0xff]
        %v1888 = vld [vmem:[%s1884 + $0x18] sm:$0xff]
        %v1889 = vld [vmem:[%s1884 + $0x20] sm:$0xff]
        %v1890 = vld [vmem:[%s1884 + $0x28] sm:$0xff]
        %v1891 = vld [vmem:[%s1884 + $0x30] sm:$0xff]
        %v1892 = vld [vmem:[%s1884 + $0x38] sm:$0xff]
        %v1893 = vld [vmem:[%s1884 + $0x40] sm:$0xff]
        %v1894 = vld [vmem:[%s1884 + $0x48] sm:$0xff]
        %v1895 = vld [vmem:[%s1884 + $0x50] sm:$0xff]
        %v1896 = vld [vmem:[%s1884 + $0x58] sm:$0xff]
        %v1897 = vld [vmem:[%s1884 + $0x60] sm:$0xff]
        %v1898 = vld [vmem:[%s1884 + $0x68] sm:$0xff]
        %v1899 = vld [vmem:[%s1884 + $0x70] sm:$0xff]
        %v1900 = vld [vmem:[%s1884 + $0x78] sm:$0xff]
        %v1901 = vmul.f32 %v1831, %v1883
        %v1902 = vmul.f32 %v1833, %v1883
        %v1903 = vmul.f32 %v1835, %v1883
        %v1904 = vmul.f32 %v1837, %v1883
        %v1905 = vmul.f32 %v1839, %v1883
        %v1906 = vmul.f32 %v1841, %v1883
        %v1907 = vmul.f32 %v1843, %v1883
        %v1908 = vmul.f32 %v1845, %v1883
        %v1909 = vmul.f32 %v1847, %v1883
        %v1910 = vmul.f32 %v1849, %v1883
        %v1911 = vmul.f32 %v1851, %v1883
        %v1912 = vmul.f32 %v1853, %v1883
        %v1913 = vmul.f32 %v1855, %v1883
        %v1914 = vmul.f32 %v1857, %v1883
        %v1915 = vmul.f32 %v1859, %v1883
        %v1916 = vmul.f32 %v1861, %v1883
        %v1917 = vmul.f32 %v1442, %v1901
        %v1918 = vmul.f32 %v1442, %v1902
        %v1919 = vmul.f32 %v1442, %v1903
        %v1920 = vmul.f32 %v1442, %v1904
        %v1921 = vmul.f32 %v1442, %v1905
        %v1922 = vmul.f32 %v1442, %v1906
        %v1923 = vmul.f32 %v1442, %v1907
        %v1924 = vmul.f32 %v1442, %v1908
        %v1925 = vmul.f32 %v1442, %v1909
        %v1926 = vmul.f32 %v1442, %v1910
        %v1927 = vmul.f32 %v1442, %v1911
        %v1928 = vmul.f32 %v1442, %v1912
        %v1929 = vmul.f32 %v1442, %v1913
        %v1930 = vmul.f32 %v1442, %v1914
        %v1931 = vmul.f32 %v1442, %v1915
        %v1932 = vmul.f32 %v1442, %v1916
        %v1933 = vadd.f32 %v1885, %v1917
        %v1934 = vadd.f32 %v1886, %v1918
        %v1935 = vadd.f32 %v1887, %v1919
        %v1936 = vadd.f32 %v1888, %v1920
        %v1937 = vadd.f32 %v1889, %v1921
        %v1938 = vadd.f32 %v1890, %v1922
        %v1939 = vadd.f32 %v1891, %v1923
        %v1940 = vadd.f32 %v1892, %v1924
        %v1941 = vadd.f32 %v1893, %v1925
        %v1942 = vadd.f32 %v1894, %v1926
        %v1943 = vadd.f32 %v1895, %v1927
        %v1944 = vadd.f32 %v1896, %v1928
        %v1945 = vadd.f32 %v1897, %v1929
        %v1946 = vadd.f32 %v1898, %v1930
        %v1947 = vadd.f32 %v1899, %v1931
        %v1948 = vadd.f32 %v1900, %v1932
        %1949 = vmatprep.subr.mxu0 0.0
        %1950 = vmatpush1.msra.mxu0 %v1933
        %1951 = vmatprep.subr.mxu0 0.0
        %1952 = vmatpush1.msra.mxu0 %v1934
        %1953 = vmatprep.subr.mxu0 0.0
        %1954 = vmatpush1.msra.mxu0 %v1935
        %1955 = vmatprep.subr.mxu0 0.0
        %1956 = vmatpush1.msra.mxu0 %v1936
        %1957 = vmatprep.subr.mxu0 0.0
        %1958 = vmatpush1.msra.mxu0 %v1937
        %1959 = vmatprep.subr.mxu0 0.0
        %1960 = vmatpush1.msra.mxu0 %v1938
        %1961 = vmatprep.subr.mxu0 0.0
        %1962 = vmatpush1.msra.mxu0 %v1939
        %1963 = vmatprep.subr.mxu0 0.0
        %1964 = vmatpush1.msra.mxu0 %v1940
        %1965 = vmatprep.subr.mxu0 0.0
        %1966 = vmatpush1.msra.mxu0 %v1941
        %1967 = vmatprep.subr.mxu0 0.0
        %1968 = vmatpush1.msra.mxu0 %v1942
        %1969 = vmatprep.subr.mxu0 0.0
        %1970 = vmatpush1.msra.mxu0 %v1943
        %1971 = vmatprep.subr.mxu0 0.0
        %1972 = vmatpush1.msra.mxu0 %v1944
        %1973 = vmatprep.subr.mxu0 0.0
        %1974 = vmatpush1.msra.mxu0 %v1945
        %1975 = vmatprep.subr.mxu0 0.0
        %1976 = vmatpush1.msra.mxu0 %v1946
        %1977 = vmatprep.subr.mxu0 0.0
        %1978 = vmatpush1.msra.mxu0 %v1947
        %1979 = vmatprep.subr.mxu0 0.0
        %1980 = vmatpush1.msra.mxu0 %v1948
        %1981 = vmatprep.subr.mxu0 0.0
        %1982 = vmatpush1.msra.mxu0 0.0
        %1983 = vmatprep.subr.mxu0 0.0
        %1984 = vmatpush1.msra.mxu0 0.0
        %1985 = vmatprep.subr.mxu0 0.0
        %1986 = vmatpush1.msra.mxu0 0.0
        %1987 = vmatprep.subr.mxu0 0.0
        %1988 = vmatpush1.msra.mxu0 0.0
        %1989 = vmatprep.subr.mxu0 0.0
        %1990 = vmatpush1.msra.mxu0 0.0
        %1991 = vmatprep.subr.mxu0 0.0
        %1992 = vmatpush1.msra.mxu0 0.0
        %1993 = vmatprep.subr.mxu0 0.0
        %1994 = vmatpush1.msra.mxu0 0.0
        %1995 = vmatprep.subr.mxu0 0.0
        %1996 = vmatpush1.msra.mxu0 0.0
        %1997 = vmatprep.subr.mxu0 0.0
        %1998 = vmatpush1.msra.mxu0 0.0
        %1999 = vmatprep.subr.mxu0 0.0
        %2000 = vmatpush1.msra.mxu0 0.0
        %2001 = vmatprep.subr.mxu0 0.0
        %2002 = vmatpush1.msra.mxu0 0.0
        %2003 = vmatprep.subr.mxu0 0.0
        %2004 = vmatpush1.msra.mxu0 0.0
        %2005 = vmatprep.subr.mxu0 0.0
        %2006 = vmatpush1.msra.mxu0 0.0
        %2007 = vmatprep.subr.mxu0 0.0
        %2008 = vmatpush1.msra.mxu0 0.0
        %2009 = vmatprep.subr.mxu0 0.0
        %2010 = vmatpush1.msra.mxu0 0.0
        %2011 = vmatprep.subr.mxu0 0.0
        %2012 = vmatpush1.msra.mxu0 0.0
        %2013 = vmatprep.mubr.f32.mxu0 0.0
        %2014 = vmatmul.mubr.f32.gmra.mrb[0].mxu0 %v530
        %v2015 = vpop.f32.mrb[0].mxu0
        %v2016 = vadd.f32 0.0, %v2015
        %v2017 = vpop.f32.mrb[0].mxu0
        %2018 = vdwg.mxu0
        %2019 = vmatprep.subr.mxu0 0.0
        %2020 = vmatpush1.msra.mxu0 %v1459
        %2021 = vmatprep.subr.mxu0 0.0
        %2022 = vmatpush1.msra.mxu0 %v1460
        %2023 = vmatprep.subr.mxu0 0.0
        %2024 = vmatpush1.msra.mxu0 %v1461
        %2025 = vmatprep.subr.mxu0 0.0
        %2026 = vmatpush1.msra.mxu0 %v1462
        %2027 = vmatprep.subr.mxu0 0.0
        %2028 = vmatpush1.msra.mxu0 %v1463
        %2029 = vmatprep.subr.mxu0 0.0
        %2030 = vmatpush1.msra.mxu0 %v1464
        %2031 = vmatprep.subr.mxu0 0.0
        %2032 = vmatpush1.msra.mxu0 %v1465
        %2033 = vmatprep.subr.mxu0 0.0
        %2034 = vmatpush1.msra.mxu0 %v1466
        %2035 = vmatprep.subr.mxu0 0.0
        %2036 = vmatpush1.msra.mxu0 %v1467
        %2037 = vmatprep.subr.mxu0 0.0
        %2038 = vmatpush1.msra.mxu0 %v1468
        %2039 = vmatprep.subr.mxu0 0.0
        %2040 = vmatpush1.msra.mxu0 %v1469
        %2041 = vmatprep.subr.mxu0 0.0
        %2042 = vmatpush1.msra.mxu0 %v1470
        %2043 = vmatprep.subr.mxu0 0.0
        %2044 = vmatpush1.msra.mxu0 %v1471
        %2045 = vmatprep.subr.mxu0 0.0
        %2046 = vmatpush1.msra.mxu0 %v1472
        %2047 = vmatprep.subr.mxu0 0.0
        %2048 = vmatpush1.msra.mxu0 %v1473
        %2049 = vmatprep.subr.mxu0 0.0
        %2050 = vmatpush1.msra.mxu0 %v1474
        %2051 = vmatprep.subr.mxu0 0.0
        %2052 = vmatpush1.msra.mxu0 0.0
        %2053 = vmatprep.subr.mxu0 0.0
        %2054 = vmatpush1.msra.mxu0 0.0
        %2055 = vmatprep.subr.mxu0 0.0
        %2056 = vmatpush1.msra.mxu0 0.0
        %2057 = vmatprep.subr.mxu0 0.0
        %2058 = vmatpush1.msra.mxu0 0.0
        %2059 = vmatprep.subr.mxu0 0.0
        %2060 = vmatpush1.msra.mxu0 0.0
        %2061 = vmatprep.subr.mxu0 0.0
        %2062 = vmatpush1.msra.mxu0 0.0
        %2063 = vmatprep.subr.mxu0 0.0
        %2064 = vmatpush1.msra.mxu0 0.0
        %2065 = vmatprep.subr.mxu0 0.0
        %2066 = vmatpush1.msra.mxu0 0.0
        %2067 = vmatprep.subr.mxu0 0.0
        %2068 = vmatpush1.msra.mxu0 0.0
        %2069 = vmatprep.subr.mxu0 0.0
        %2070 = vmatpush1.msra.mxu0 0.0
        %2071 = vmatprep.subr.mxu0 0.0
        %2072 = vmatpush1.msra.mxu0 0.0
        %2073 = vmatprep.subr.mxu0 0.0
        %2074 = vmatpush1.msra.mxu0 0.0
        %2075 = vmatprep.subr.mxu0 0.0
        %2076 = vmatpush1.msra.mxu0 0.0
        %2077 = vmatprep.subr.mxu0 0.0
        %2078 = vmatpush1.msra.mxu0 0.0
        %2079 = vmatprep.subr.mxu0 0.0
        %2080 = vmatpush1.msra.mxu0 0.0
        %2081 = vmatprep.subr.mxu0 0.0
        %2082 = vmatpush1.msra.mxu0 0.0
        %2083 = vmatprep.mubr.f32.mxu0 0.0
        %2084 = vmatmul.mubr.f32.gmra.mrb[0].mxu0 %v525
        %v2085 = vpop.f32.mrb[0].mxu0
        %v2086 = vadd.f32 %v2016, %v2085
        %v2087 = vpop.f32.mrb[0].mxu0
        %2088 = vdwg.mxu0
        %v2089 = vld [vmem:[#allocation2 + $0x80] sm:$0xff]
        %2090 = vst.msk [vmem:[#allocation3] sm:$0xff] %vm968, %v2089
        %v2091 = vld [vmem:[#allocation2 + $0x88] sm:$0xff]
        %2093 = vrot.lane.b32.xlu0 %v2091, 16
        %v2094 = vpop.permute.xlu0 %2093
        %2096 = vst.msk [vmem:[#allocation3] sm:$0xff] %vm1000, %v2094
        %v2097 = vld [vmem:[#allocation2 + $0x90] sm:$0xff]
        %2099 = vrot.lane.b32.xlu0 %v2097, 32
        %v2100 = vpop.permute.xlu0 %2099
        %2102 = vst.msk [vmem:[#allocation3] sm:$0xff] %vm1007, %v2100
        %v2103 = vld [vmem:[#allocation2 + $0x98] sm:$0xff]
        %2105 = vrot.lane.b32.xlu0 %v2103, 48
        %v2106 = vpop.permute.xlu0 %2105
        %2108 = vst.msk [vmem:[#allocation3] sm:$0xff] %vm1014, %v2106
        %v2109 = vld [vmem:[#allocation2 + $0xa0] sm:$0xff]
        %2111 = vrot.lane.b32.xlu0 %v2109, 64
        %v2112 = vpop.permute.xlu0 %2111
        %2114 = vst.msk [vmem:[#allocation3] sm:$0xff] %vm1021, %v2112
        %v2115 = vld [vmem:[#allocation2 + $0xa8] sm:$0xff]
        %2117 = vrot.lane.b32.xlu0 %v2115, 80
        %v2118 = vpop.permute.xlu0 %2117
        %2120 = vst.msk [vmem:[#allocation3] sm:$0xff] %vm1028, %v2118
        %v2121 = vld [vmem:[#allocation2 + $0xb0] sm:$0xff]
        %2123 = vrot.lane.b32.xlu0 %v2121, 96
        %v2124 = vpop.permute.xlu0 %2123
        %2126 = vst.msk [vmem:[#allocation3] sm:$0xff] %vm1035, %v2124
        %v2127 = vld [vmem:[#allocation2 + $0xb8] sm:$0xff]
        %2129 = vrot.lane.b32.xlu0 %v2127, 112
        %v2130 = vpop.permute.xlu0 %2129
        %2132 = vst.msk [vmem:[#allocation3] sm:$0xff] %vm1042, %v2130
        %v2133 = vld [vmem:[#allocation3] sm:$0xff]
        %2134 = vxpose.xlu0.b32.start [1/16] %v520, 128
        %2135 = vxpose.xlu0.b32.cont [2/16] 0.0, 128
        %2136 = vxpose.xlu0.b32.cont [3/16] 0.0, 128
        %2137 = vxpose.xlu0.b32.cont [4/16] 0.0, 128
        %2138 = vxpose.xlu0.b32.cont [5/16] 0.0, 128
        %2139 = vxpose.xlu0.b32.cont [6/16] 0.0, 128
        %2140 = vxpose.xlu0.b32.cont [7/16] 0.0, 128
        %2141 = vxpose.xlu0.b32.cont [8/16] 0.0, 128
        %2142 = vxpose.xlu0.b32.cont [9/16] 0.0, 128
        %2143 = vxpose.xlu0.b32.cont [10/16] 0.0, 128
        %2144 = vxpose.xlu0.b32.cont [11/16] 0.0, 128
        %2145 = vxpose.xlu0.b32.cont [12/16] 0.0, 128
        %2146 = vxpose.xlu0.b32.cont [13/16] 0.0, 128
        %2147 = vxpose.xlu0.b32.cont [14/16] 0.0, 128
        %2148 = vxpose.xlu0.b32.cont [15/16] 0.0, 128
        %2149 = vxpose.xlu0.b32.end [16/16] 0.0, 128
        %v2150 = vpop.trf.xlu0
        %v2151 = vpop.trf.xlu0
        %v2152 = vpop.trf.xlu0
        %v2153 = vpop.trf.xlu0
        %v2154 = vpop.trf.xlu0
        %v2155 = vpop.trf.xlu0
        %v2156 = vpop.trf.xlu0
        %v2157 = vpop.trf.xlu0
        %v2158 = vpop.trf.xlu0
        %v2159 = vpop.trf.xlu0
        %v2160 = vpop.trf.xlu0
        %v2161 = vpop.trf.xlu0
        %v2162 = vpop.trf.xlu0
        %v2163 = vpop.trf.xlu0
        %v2164 = vpop.trf.xlu0
        %v2165 = vpop.trf.xlu0
        %v2167 = vsel %vm1077, %v2150, 0
        %v2170 = vsel %vm1077, %v2151, 0
        %v2173 = vsel %vm1077, %v2152, 0
        %v2176 = vsel %vm1077, %v2153, 0
        %v2179 = vsel %vm1077, %v2154, 0
        %v2182 = vsel %vm1077, %v2155, 0
        %v2185 = vsel %vm1077, %v2156, 0
        %v2188 = vsel %vm1077, %v2157, 0
        %v2191 = vsel %vm1077, %v2158, 0
        %v2194 = vsel %vm1077, %v2159, 0
        %v2197 = vsel %vm1077, %v2160, 0
        %v2200 = vsel %vm1077, %v2161, 0
        %v2203 = vsel %vm1077, %v2162, 0
        %v2206 = vsel %vm1077, %v2163, 0
        %v2209 = vsel %vm1077, %v2164, 0
        %v2212 = vsel %vm1077, %v2165, 0
        %2214 = vmatprep.subr.mxu0 0.0
        %2215 = vmatpush1.msra.mxu0 %v2133
        %2216 = vmatprep.subr.mxu0 0.0
        %2217 = vmatpush1.msra.mxu0 0.0
        %2218 = vmatprep.subr.mxu0 0.0
        %2219 = vmatpush1.msra.mxu0 0.0
        %2220 = vmatprep.subr.mxu0 0.0
        %2221 = vmatpush1.msra.mxu0 0.0
        %2222 = vmatprep.subr.mxu0 0.0
        %2223 = vmatpush1.msra.mxu0 0.0
        %2224 = vmatprep.subr.mxu0 0.0
        %2225 = vmatpush1.msra.mxu0 0.0
        %2226 = vmatprep.subr.mxu0 0.0
        %2227 = vmatpush1.msra.mxu0 0.0
        %2228 = vmatprep.subr.mxu0 0.0
        %2229 = vmatpush1.msra.mxu0 0.0
        %2230 = vmatprep.subr.mxu0 0.0
        %2231 = vmatpush1.msra.mxu0 0.0
        %2232 = vmatprep.subr.mxu0 0.0
        %2233 = vmatpush1.msra.mxu0 0.0
        %2234 = vmatprep.subr.mxu0 0.0
        %2235 = vmatpush1.msra.mxu0 0.0
        %2236 = vmatprep.subr.mxu0 0.0
        %2237 = vmatpush1.msra.mxu0 0.0
        %2238 = vmatprep.subr.mxu0 0.0
        %2239 = vmatpush1.msra.mxu0 0.0
        %2240 = vmatprep.subr.mxu0 0.0
        %2241 = vmatpush1.msra.mxu0 0.0
        %2242 = vmatprep.subr.mxu0 0.0
        %2243 = vmatpush1.msra.mxu0 0.0
        %2244 = vmatprep.subr.mxu0 0.0
        %2245 = vmatpush1.msra.mxu0 0.0
        %2246 = vmatprep.subr.mxu0 0.0
        %2247 = vmatpush1.msra.mxu0 0.0
        %2248 = vmatprep.subr.mxu0 0.0
        %2249 = vmatpush1.msra.mxu0 0.0
        %2250 = vmatprep.subr.mxu0 0.0
        %2251 = vmatpush1.msra.mxu0 0.0
        %2252 = vmatprep.subr.mxu0 0.0
        %2253 = vmatpush1.msra.mxu0 0.0
        %2254 = vmatprep.subr.mxu0 0.0
        %2255 = vmatpush1.msra.mxu0 0.0
        %2256 = vmatprep.subr.mxu0 0.0
        %2257 = vmatpush1.msra.mxu0 0.0
        %2258 = vmatprep.subr.mxu0 0.0
        %2259 = vmatpush1.msra.mxu0 0.0
        %2260 = vmatprep.subr.mxu0 0.0
        %2261 = vmatpush1.msra.mxu0 0.0
        %2262 = vmatprep.subr.mxu0 0.0
        %2263 = vmatpush1.msra.mxu0 0.0
        %2264 = vmatprep.subr.mxu0 0.0
        %2265 = vmatpush1.msra.mxu0 0.0
        %2266 = vmatprep.subr.mxu0 0.0
        %2267 = vmatpush1.msra.mxu0 0.0
        %2268 = vmatprep.subr.mxu0 0.0
        %2269 = vmatpush1.msra.mxu0 0.0
        %2270 = vmatprep.subr.mxu0 0.0
        %2271 = vmatpush1.msra.mxu0 0.0
        %2272 = vmatprep.subr.mxu0 0.0
        %2273 = vmatpush1.msra.mxu0 0.0
        %2274 = vmatprep.subr.mxu0 0.0
        %2275 = vmatpush1.msra.mxu0 0.0
        %2276 = vmatprep.subr.mxu0 0.0
        %2277 = vmatpush1.msra.mxu0 0.0
        %2278 = vmatprep.mubr.f32.mxu0 0.0
        %2279 = vmatmul.mubr.f32.gmra.mrb[0].mxu0 %v2167
        %v2280 = vpop.f32.mrb[0].mxu0
        %v2281 = vadd.f32 0.0, %v2280
        %v2282 = vpop.f32.mrb[0].mxu0
        %2283 = vmatprep.mubr.f32.mxu0 0.0
        %2284 = vmatmul.mubr.f32.gmra.mrb[0].mxu0 %v2170
        %v2285 = vpop.f32.mrb[0].mxu0
        %v2286 = vadd.f32 0.0, %v2285
        %v2287 = vpop.f32.mrb[0].mxu0
        %2288 = vmatprep.mubr.f32.mxu0 0.0
        %2289 = vmatmul.mubr.f32.gmra.mrb[0].mxu0 %v2173
        %v2290 = vpop.f32.mrb[0].mxu0
        %v2291 = vadd.f32 0.0, %v2290
        %v2292 = vpop.f32.mrb[0].mxu0
        %2293 = vmatprep.mubr.f32.mxu0 0.0
        %2294 = vmatmul.mubr.f32.gmra.mrb[0].mxu0 %v2176
        %v2295 = vpop.f32.mrb[0].mxu0
        %v2296 = vadd.f32 0.0, %v2295
        %v2297 = vpop.f32.mrb[0].mxu0
        %2298 = vmatprep.mubr.f32.mxu0 0.0
        %2299 = vmatmul.mubr.f32.gmra.mrb[0].mxu0 %v2179
        %v2300 = vpop.f32.mrb[0].mxu0
        %v2301 = vadd.f32 0.0, %v2300
        %v2302 = vpop.f32.mrb[0].mxu0
        %2303 = vmatprep.mubr.f32.mxu0 0.0
        %2304 = vmatmul.mubr.f32.gmra.mrb[0].mxu0 %v2182
        %v2305 = vpop.f32.mrb[0].mxu0
        %v2306 = vadd.f32 0.0, %v2305
        %v2307 = vpop.f32.mrb[0].mxu0
        %2308 = vmatprep.mubr.f32.mxu0 0.0
        %2309 = vmatmul.mubr.f32.gmra.mrb[0].mxu0 %v2185
        %v2310 = vpop.f32.mrb[0].mxu0
        %v2311 = vadd.f32 0.0, %v2310
        %v2312 = vpop.f32.mrb[0].mxu0
        %2313 = vmatprep.mubr.f32.mxu0 0.0
        %2314 = vmatmul.mubr.f32.gmra.mrb[0].mxu0 %v2188
        %v2315 = vpop.f32.mrb[0].mxu0
        %v2316 = vadd.f32 0.0, %v2315
        %v2317 = vpop.f32.mrb[0].mxu0
        %2318 = vmatprep.mubr.f32.mxu0 0.0
        %2319 = vmatmul.mubr.f32.gmra.mrb[0].mxu0 %v2191
        %v2320 = vpop.f32.mrb[0].mxu0
        %v2321 = vadd.f32 0.0, %v2320
        %v2322 = vpop.f32.mrb[0].mxu0
        %2323 = vmatprep.mubr.f32.mxu0 0.0
        %2324 = vmatmul.mubr.f32.gmra.mrb[0].mxu0 %v2194
        %v2325 = vpop.f32.mrb[0].mxu0
        %v2326 = vadd.f32 0.0, %v2325
        %v2327 = vpop.f32.mrb[0].mxu0
        %2328 = vmatprep.mubr.f32.mxu0 0.0
        %2329 = vmatmul.mubr.f32.gmra.mrb[0].mxu0 %v2197
        %v2330 = vpop.f32.mrb[0].mxu0
        %v2331 = vadd.f32 0.0, %v2330
        %v2332 = vpop.f32.mrb[0].mxu0
        %2333 = vmatprep.mubr.f32.mxu0 0.0
        %2334 = vmatmul.mubr.f32.gmra.mrb[0].mxu0 %v2200
        %v2335 = vpop.f32.mrb[0].mxu0
        %v2336 = vadd.f32 0.0, %v2335
        %v2337 = vpop.f32.mrb[0].mxu0
        %2338 = vmatprep.mubr.f32.mxu0 0.0
        %2339 = vmatmul.mubr.f32.gmra.mrb[0].mxu0 %v2203
        %v2340 = vpop.f32.mrb[0].mxu0
        %v2341 = vadd.f32 0.0, %v2340
        %v2342 = vpop.f32.mrb[0].mxu0
        %2343 = vmatprep.mubr.f32.mxu0 0.0
        %2344 = vmatmul.mubr.f32.gmra.mrb[0].mxu0 %v2206
        %v2345 = vpop.f32.mrb[0].mxu0
        %v2346 = vadd.f32 0.0, %v2345
        %v2347 = vpop.f32.mrb[0].mxu0
        %2348 = vmatprep.mubr.f32.mxu0 0.0
        %2349 = vmatmul.mubr.f32.gmra.mrb[0].mxu0 %v2209
        %v2350 = vpop.f32.mrb[0].mxu0
        %v2351 = vadd.f32 0.0, %v2350
        %v2352 = vpop.f32.mrb[0].mxu0
        %2353 = vmatprep.mubr.f32.mxu0 0.0
        %2354 = vmatmul.mubr.f32.gmra.mrb[0].mxu0 %v2212
        %v2355 = vpop.f32.mrb[0].mxu0
        %v2356 = vadd.f32 0.0, %v2355
        %v2357 = vpop.f32.mrb[0].mxu0
        %2358 = vdwg.mxu0
        %v2359 = vmul.f32 %v2281, 0.125
        %v2360 = vmul.f32 %v2286, 0.125
        %v2361 = vmul.f32 %v2291, 0.125
        %v2362 = vmul.f32 %v2296, 0.125
        %v2363 = vmul.f32 %v2301, 0.125
        %v2364 = vmul.f32 %v2306, 0.125
        %v2365 = vmul.f32 %v2311, 0.125
        %v2366 = vmul.f32 %v2316, 0.125
        %v2367 = vmul.f32 %v2321, 0.125
        %v2368 = vmul.f32 %v2326, 0.125
        %v2369 = vmul.f32 %v2331, 0.125
        %v2370 = vmul.f32 %v2336, 0.125
        %v2371 = vmul.f32 %v2341, 0.125
        %v2372 = vmul.f32 %v2346, 0.125
        %v2373 = vmul.f32 %v2351, 0.125
        %v2374 = vmul.f32 %v2356, 0.125
        %v2375 = vld [vmem:[%s4] sm:$0xff]
        %v2376 = vld [vmem:[%s4 + $0x8] sm:$0xff]
        %v2377 = vld [vmem:[%s4 + $0x10] sm:$0xff]
        %v2378 = vld [vmem:[%s4 + $0x18] sm:$0xff]
        %v2379 = vld [vmem:[%s4 + $0x20] sm:$0xff]
        %v2380 = vld [vmem:[%s4 + $0x28] sm:$0xff]
        %v2381 = vld [vmem:[%s4 + $0x30] sm:$0xff]
        %v2382 = vld [vmem:[%s4 + $0x38] sm:$0xff]
        %v2383 = vld [vmem:[%s4 + $0x40] sm:$0xff]
        %v2384 = vld [vmem:[%s4 + $0x48] sm:$0xff]
        %v2385 = vld [vmem:[%s4 + $0x50] sm:$0xff]
        %v2386 = vld [vmem:[%s4 + $0x58] sm:$0xff]
        %v2387 = vld [vmem:[%s4 + $0x60] sm:$0xff]
        %v2388 = vld [vmem:[%s4 + $0x68] sm:$0xff]
        %v2389 = vld [vmem:[%s4 + $0x70] sm:$0xff]
        %v2390 = vld [vmem:[%s4 + $0x78] sm:$0xff]
        %v2391 = vadd.f32 %v2359, %v2375
        %v2392 = vadd.f32 %v2360, %v2376
        %v2393 = vadd.f32 %v2361, %v2377
        %v2394 = vadd.f32 %v2362, %v2378
        %v2395 = vadd.f32 %v2363, %v2379
        %v2396 = vadd.f32 %v2364, %v2380
        %v2397 = vadd.f32 %v2365, %v2381
        %v2398 = vadd.f32 %v2366, %v2382
        %v2399 = vadd.f32 %v2367, %v2383
        %v2400 = vadd.f32 %v2368, %v2384
        %v2401 = vadd.f32 %v2369, %v2385
        %v2402 = vadd.f32 %v2370, %v2386
        %v2403 = vadd.f32 %v2371, %v2387
        %v2404 = vadd.f32 %v2372, %v2388
        %v2405 = vadd.f32 %v2373, %v2389
        %v2406 = vadd.f32 %v2374, %v2390
        %v2407 = vmax.f32 %v2391, %v2395
        %v2408 = vmax.f32 %v2392, %v2396
        %v2409 = vmax.f32 %v2393, %v2397
        %v2410 = vmax.f32 %v2394, %v2398
        %v2411 = vmax.f32 %v2407, %v2399
        %v2412 = vmax.f32 %v2408, %v2400
        %v2413 = vmax.f32 %v2409, %v2401
        %v2414 = vmax.f32 %v2410, %v2402
        %v2415 = vmax.f32 %v2411, %v2403
        %v2416 = vmax.f32 %v2412, %v2404
        %v2417 = vmax.f32 %v2413, %v2405
        %v2418 = vmax.f32 %v2414, %v2406
        %v2419 = vmax.f32 %v2415, %v2416
        %v2420 = vmax.f32 %v2417, %v2418
        %v2421 = vmax.f32 %v2419, %v2420
        %v2422 = vrot.slane %v2421, 4
        %v2423 = vmax.f32 %v2421, %v2422
        %v2424 = vrot.slane %v2423, 2
        %v2425 = vmax.f32 %v2423, %v2424
        %v2426 = vrot.slane %v2425, 1
        %v2427 = vmax.f32 %v2425, %v2426
        %v2428 = vsub.f32 %v2391, %v2427
        %v2429 = vsub.f32 %v2392, %v2427
        %v2430 = vsub.f32 %v2393, %v2427
        %v2431 = vsub.f32 %v2394, %v2427
        %v2432 = vsub.f32 %v2395, %v2427
        %v2433 = vsub.f32 %v2396, %v2427
        %v2434 = vsub.f32 %v2397, %v2427
        %v2435 = vsub.f32 %v2398, %v2427
        %v2436 = vsub.f32 %v2399, %v2427
        %v2437 = vsub.f32 %v2400, %v2427
        %v2438 = vsub.f32 %v2401, %v2427
        %v2439 = vsub.f32 %v2402, %v2427
        %v2440 = vsub.f32 %v2403, %v2427
        %v2441 = vsub.f32 %v2404, %v2427
        %v2442 = vsub.f32 %v2405, %v2427
        %v2443 = vsub.f32 %v2406, %v2427
        %v2444 = vmul.f32 %v2428, 1.442695
        %v2445 = vpow.pop %v2444
        %v2446 = vmul.f32 %v2429, 1.442695
        %v2447 = vpow.pop %v2446
        %v2448 = vmul.f32 %v2430, 1.442695
        %v2449 = vpow.pop %v2448
        %v2450 = vmul.f32 %v2431, 1.442695
        %v2451 = vpow.pop %v2450
        %v2452 = vmul.f32 %v2432, 1.442695
        %v2453 = vpow.pop %v2452
        %v2454 = vmul.f32 %v2433, 1.442695
        %v2455 = vpow.pop %v2454
        %v2456 = vmul.f32 %v2434, 1.442695
        %v2457 = vpow.pop %v2456
        %v2458 = vmul.f32 %v2435, 1.442695
        %v2459 = vpow.pop %v2458
        %v2460 = vmul.f32 %v2436, 1.442695
        %v2461 = vpow.pop %v2460
        %v2462 = vmul.f32 %v2437, 1.442695
        %v2463 = vpow.pop %v2462
        %v2464 = vmul.f32 %v2438, 1.442695
        %v2465 = vpow.pop %v2464
        %v2466 = vmul.f32 %v2439, 1.442695
        %v2467 = vpow.pop %v2466
        %v2468 = vmul.f32 %v2440, 1.442695
        %v2469 = vpow.pop %v2468
        %v2470 = vmul.f32 %v2441, 1.442695
        %v2471 = vpow.pop %v2470
        %v2472 = vmul.f32 %v2442, 1.442695
        %v2473 = vpow.pop %v2472
        %v2474 = vmul.f32 %v2443, 1.442695
        %v2475 = vpow.pop %v2474
        %v2476 = vadd.f32 %v2445, %v2447
        %v2477 = vadd.f32 %v2476, %v2449
        %v2478 = vadd.f32 %v2477, %v2451
        %v2479 = vadd.f32 %v2478, %v2453
        %v2480 = vadd.f32 %v2479, %v2455
        %v2481 = vadd.f32 %v2480, %v2457
        %v2482 = vadd.f32 %v2481, %v2459
        %v2483 = vadd.f32 %v2482, %v2461
        %v2484 = vadd.f32 %v2483, %v2463
        %v2485 = vadd.f32 %v2484, %v2465
        %v2486 = vadd.f32 %v2485, %v2467
        %v2487 = vadd.f32 %v2486, %v2469
        %v2488 = vadd.f32 %v2487, %v2471
        %v2489 = vadd.f32 %v2488, %v2473
        %v2490 = vadd.f32 %v2489, %v2475
        %v2491 = vrot.slane %v2490, 4
        %v2492 = vadd.f32 %v2490, %v2491
        %v2493 = vrot.slane %v2492, 2
        %v2494 = vadd.f32 %v2492, %v2493
        %v2495 = vrot.slane %v2494, 1
        %v2496 = vadd.f32 %v2494, %v2495
        %v2497 = vrcp.pop %v2496
        %s2498 = scalar_lea.vmem %s3, 256
        %v2499 = vld [vmem:[%s2498] sm:$0xff]
        %v2500 = vld [vmem:[%s2498 + $0x8] sm:$0xff]
        %v2501 = vld [vmem:[%s2498 + $0x10] sm:$0xff]
        %v2502 = vld [vmem:[%s2498 + $0x18] sm:$0xff]
        %v2503 = vld [vmem:[%s2498 + $0x20] sm:$0xff]
        %v2504 = vld [vmem:[%s2498 + $0x28] sm:$0xff]
        %v2505 = vld [vmem:[%s2498 + $0x30] sm:$0xff]
        %v2506 = vld [vmem:[%s2498 + $0x38] sm:$0xff]
        %v2507 = vld [vmem:[%s2498 + $0x40] sm:$0xff]
        %v2508 = vld [vmem:[%s2498 + $0x48] sm:$0xff]
        %v2509 = vld [vmem:[%s2498 + $0x50] sm:$0xff]
        %v2510 = vld [vmem:[%s2498 + $0x58] sm:$0xff]
        %v2511 = vld [vmem:[%s2498 + $0x60] sm:$0xff]
        %v2512 = vld [vmem:[%s2498 + $0x68] sm:$0xff]
        %v2513 = vld [vmem:[%s2498 + $0x70] sm:$0xff]
        %v2514 = vld [vmem:[%s2498 + $0x78] sm:$0xff]
        %v2515 = vmul.f32 %v2445, %v2497
        %v2516 = vmul.f32 %v2447, %v2497
        %v2517 = vmul.f32 %v2449, %v2497
        %v2518 = vmul.f32 %v2451, %v2497
        %v2519 = vmul.f32 %v2453, %v2497
        %v2520 = vmul.f32 %v2455, %v2497
        %v2521 = vmul.f32 %v2457, %v2497
        %v2522 = vmul.f32 %v2459, %v2497
        %v2523 = vmul.f32 %v2461, %v2497
        %v2524 = vmul.f32 %v2463, %v2497
        %v2525 = vmul.f32 %v2465, %v2497
        %v2526 = vmul.f32 %v2467, %v2497
        %v2527 = vmul.f32 %v2469, %v2497
        %v2528 = vmul.f32 %v2471, %v2497
        %v2529 = vmul.f32 %v2473, %v2497
        %v2530 = vmul.f32 %v2475, %v2497
        %v2531 = vmul.f32 %v1442, %v2515
        %v2532 = vmul.f32 %v1442, %v2516
        %v2533 = vmul.f32 %v1442, %v2517
        %v2534 = vmul.f32 %v1442, %v2518
        %v2535 = vmul.f32 %v1442, %v2519
        %v2536 = vmul.f32 %v1442, %v2520
        %v2537 = vmul.f32 %v1442, %v2521
        %v2538 = vmul.f32 %v1442, %v2522
        %v2539 = vmul.f32 %v1442, %v2523
        %v2540 = vmul.f32 %v1442, %v2524
        %v2541 = vmul.f32 %v1442, %v2525
        %v2542 = vmul.f32 %v1442, %v2526
        %v2543 = vmul.f32 %v1442, %v2527
        %v2544 = vmul.f32 %v1442, %v2528
        %v2545 = vmul.f32 %v1442, %v2529
        %v2546 = vmul.f32 %v1442, %v2530
        %v2547 = vadd.f32 %v2499, %v2531
        %v2548 = vadd.f32 %v2500, %v2532
        %v2549 = vadd.f32 %v2501, %v2533
        %v2550 = vadd.f32 %v2502, %v2534
        %v2551 = vadd.f32 %v2503, %v2535
        %v2552 = vadd.f32 %v2504, %v2536
        %v2553 = vadd.f32 %v2505, %v2537
        %v2554 = vadd.f32 %v2506, %v2538
        %v2555 = vadd.f32 %v2507, %v2539
        %v2556 = vadd.f32 %v2508, %v2540
        %v2557 = vadd.f32 %v2509, %v2541
        %v2558 = vadd.f32 %v2510, %v2542
        %v2559 = vadd.f32 %v2511, %v2543
        %v2560 = vadd.f32 %v2512, %v2544
        %v2561 = vadd.f32 %v2513, %v2545
        %v2562 = vadd.f32 %v2514, %v2546
        %2563 = vmatprep.subr.mxu0 0.0
        %2564 = vmatpush1.msra.mxu0 %v2547
        %2565 = vmatprep.subr.mxu0 0.0
        %2566 = vmatpush1.msra.mxu0 %v2548
        %2567 = vmatprep.subr.mxu0 0.0
        %2568 = vmatpush1.msra.mxu0 %v2549
        %2569 = vmatprep.subr.mxu0 0.0
        %2570 = vmatpush1.msra.mxu0 %v2550
        %2571 = vmatprep.subr.mxu0 0.0
        %2572 = vmatpush1.msra.mxu0 %v2551
        %2573 = vmatprep.subr.mxu0 0.0
        %2574 = vmatpush1.msra.mxu0 %v2552
        %2575 = vmatprep.subr.mxu0 0.0
        %2576 = vmatpush1.msra.mxu0 %v2553
        %2577 = vmatprep.subr.mxu0 0.0
        %2578 = vmatpush1.msra.mxu0 %v2554
        %2579 = vmatprep.subr.mxu0 0.0
        %2580 = vmatpush1.msra.mxu0 %v2555
        %2581 = vmatprep.subr.mxu0 0.0
        %2582 = vmatpush1.msra.mxu0 %v2556
        %2583 = vmatprep.subr.mxu0 0.0
        %2584 = vmatpush1.msra.mxu0 %v2557
        %2585 = vmatprep.subr.mxu0 0.0
        %2586 = vmatpush1.msra.mxu0 %v2558
        %2587 = vmatprep.subr.mxu0 0.0
        %2588 = vmatpush1.msra.mxu0 %v2559
        %2589 = vmatprep.subr.mxu0 0.0
        %2590 = vmatpush1.msra.mxu0 %v2560
        %2591 = vmatprep.subr.mxu0 0.0
        %2592 = vmatpush1.msra.mxu0 %v2561
        %2593 = vmatprep.subr.mxu0 0.0
        %2594 = vmatpush1.msra.mxu0 %v2562
        %2595 = vmatprep.subr.mxu0 0.0
        %2596 = vmatpush1.msra.mxu0 0.0
        %2597 = vmatprep.subr.mxu0 0.0
        %2598 = vmatpush1.msra.mxu0 0.0
        %2599 = vmatprep.subr.mxu0 0.0
        %2600 = vmatpush1.msra.mxu0 0.0
        %2601 = vmatprep.subr.mxu0 0.0
        %2602 = vmatpush1.msra.mxu0 0.0
        %2603 = vmatprep.subr.mxu0 0.0
        %2604 = vmatpush1.msra.mxu0 0.0
        %2605 = vmatprep.subr.mxu0 0.0
        %2606 = vmatpush1.msra.mxu0 0.0
        %2607 = vmatprep.subr.mxu0 0.0
        %2608 = vmatpush1.msra.mxu0 0.0
        %2609 = vmatprep.subr.mxu0 0.0
        %2610 = vmatpush1.msra.mxu0 0.0
        %2611 = vmatprep.subr.mxu0 0.0
        %2612 = vmatpush1.msra.mxu0 0.0
        %2613 = vmatprep.subr.mxu0 0.0
        %2614 = vmatpush1.msra.mxu0 0.0
        %2615 = vmatprep.subr.mxu0 0.0
        %2616 = vmatpush1.msra.mxu0 0.0
        %2617 = vmatprep.subr.mxu0 0.0
        %2618 = vmatpush1.msra.mxu0 0.0
        %2619 = vmatprep.subr.mxu0 0.0
        %2620 = vmatpush1.msra.mxu0 0.0
        %2621 = vmatprep.subr.mxu0 0.0
        %2622 = vmatpush1.msra.mxu0 0.0
        %2623 = vmatprep.subr.mxu0 0.0
        %2624 = vmatpush1.msra.mxu0 0.0
        %2625 = vmatprep.subr.mxu0 0.0
        %2626 = vmatpush1.msra.mxu0 0.0
        %2627 = vmatprep.mubr.f32.mxu0 0.0
        %2628 = vmatmul.mubr.f32.gmra.mrb[0].mxu0 %v535
        %v2629 = vpop.f32.mrb[0].mxu0
        %v2630 = vadd.f32 0.0, %v2629
        %v2631 = vpop.f32.mrb[0].mxu0
        %2632 = vdwg.mxu0
        %v2633 = vadd.f32 %v2086, %v2630
        %v2634 = vld [vmem:[%s9] sm:$0xff]
        %2636 = vset.pattern.permute.xlu0 0
        %2637 = vperm.xlu0 %2636, %v2634
        %v2638 = vpop.permute.xlu0 %2637
        %v2640 = vadd.f32 %v2633, %v2638
        %2641 = vst [vmem:[%s366] sm:$0xff] %v2640
        %s2642 = sand.u32 %s253, 1
        %s2643 = scalar_lea.sflag [#allocation6], %s2642
        %s2644 = sand.u32 %s253, 1
        %s2645 = smul.addr %s2644, 8
        %s2646 = scalar_lea.vmem [#allocation5], %s2645
        // Predicated region
        $region61: #{tpu_custom_call.1} parent=59 // pred_check
          %p2647 = pneg %p263
        $region62: #{tpu_custom_call.1} parent=59 // pred_check_branch
          %2649 = sbr.rel (%p2647) target = $region64
        $region63: #{tpu_custom_call.1} parent=59 // pred_region
          %s2651 = ssub.s32 128, 128
          %2652 = vsyncadd %s2643, %s2651
          %s2653 = smul.addr %s25, 128
          %s2654 = scalar_lea.hbm %s10, %s2653
          %s2656 = sshll.u32 %s2646, 4
          %s2657 = int_to_ptr.vmem [resolvable:$true] %s2656
          %2659 = dma.vmem_to_hbm [thread:$0]  %s2657, 128, %s2654, %s2643
        $region64: #{tpu_custom_call.1} parent=59 // pred_fallthru
          _
      $region60: #{tpu_custom_call.1} parent=5 // pred_fallthru
        _
      %p2660 = scmp.le.s32.totalorder 2, %s20
      // Predicated region
      $region65: #{tpu_custom_call.1} parent=5 // pred_check
        %p2661 = pneg %p2660
      $region66: #{tpu_custom_call.1} parent=5 // pred_check_branch
        %2663 = sbr.rel (%p2661) target = $region68
      $region67: #{tpu_custom_call.1} parent=5 // pred_region
        %s2664 = ssub.s32 %s20, 2
        // Predicated region
        $region69: #{tpu_custom_call.1} parent=67 // pred_check
          %p2665 = pneg %p269
        $region70: #{tpu_custom_call.1} parent=67 // pred_check_branch
          %2667 = sbr.rel (%p2665) target = $region72
        $region71: #{tpu_custom_call.1} parent=67 // pred_region
          %s2668 = sand.u32 %s254, 1
          %s2669 = scalar_lea.sflag [#allocation6], %s2668
          %s2670 = sand.u32 %s254, 1
          %s2671 = smul.addr %s2670, 8
          %s2672 = scalar_lea.vmem [#allocation5], %s2671
          %2673 = dma.done %s2669, 128
        $region72: #{tpu_custom_call.1} parent=67 // pred_fallthru
          _
      $region68: #{tpu_custom_call.1} parent=5 // pred_fallthru
        _
    $region6: #{tpu_custom_call.1} parent=1 // loop_footer
      %s24 = sadd.s32 1, %s20
    $region7: #{tpu_custom_call.1} parent=1 // loop_footer_branch
      %19 = sbr.rel target = $region3
    $region8: #{tpu_custom_call.1} parent=1 // loop_exit
      _
    %2674 = vsyncpa [#allocation6], 1
    %s2675 = scalar_lea.sflag [#allocation6], 1
    %2676 = vsyncpa %s2675, 1

</llo_original>
